<compile_context>
chip_gen: v7x
topology: tpu7x:2x2x1
jax: 0.10.0
libtpu: 0.0.40
codegen_flags: <defaults>
</compile_context>

<pallas_src>
import functools
import math

import jax
import jax.numpy as jnp
from jax.experimental import pallas as pl
from jax.experimental.pallas import tpu as pltpu


# ----------------------------------------------------------------------------
# Pallas kernel: one decoder layer for ONE batch element per grid step.
# ----------------------------------------------------------------------------
def _decoder_layer_kernel(num_heads,
                          tgt_ref, mem_ref, tmask_ref, mmask_ref,
                          swqkv_ref, sbqkv_ref, swo_ref, sbo_ref,
                          cwq_ref, cbq_ref, cwkv_ref, cbkv_ref, cwo_ref, cbo_ref,
                          w1_ref, b1_ref, w2_ref, b2_ref,
                          lng_ref, lnb_ref,
                          out_ref):
    f32 = jnp.float32
    _, S, D = tgt_ref.shape         # block is (1, S, D)
    H = num_heads
    hd = D // H
    cdt = swqkv_ref.dtype           # compute dtype (weights pre-cast in wrapper)

    def mm(a, w):
        # MXU matmul: operands in compute dtype, f32 accumulation.
        return jnp.dot(a.astype(w.dtype), w, preferred_element_type=f32)

    def layer_norm(x, g, b):
        mu = jnp.mean(x, axis=-1, keepdims=True)
        xc = x - mu
        var = jnp.mean(xc * xc, axis=-1, keepdims=True)
        return xc * jax.lax.rsqrt(var + 1e-5) * g + b

    def split_heads(x2):
        # (L, D) -> (H, L, hd) via lane slices stacked along a new (untiled)
        # leading axis -- no in-kernel transpose needed.  At production the
        # head dim should be a multiple of 128 so the slices are lane-aligned.
        return jnp.stack([x2[:, h * hd:(h + 1) * hd] for h in range(H)], axis=0)

    def merge_heads(x3):
        # (H, L, hd) -> (L, D)
        return jnp.concatenate([x3[h] for h in range(H)], axis=-1)

    def attention(q2, k2, v2, mask_add):
        # q2: (S, D) (scale pre-folded into Wq); k2/v2: (L, D); mask: (S, L).
        qh = split_heads(q2.astype(cdt))
        kh = split_heads(k2.astype(cdt))
        vh = split_heads(v2.astype(cdt))
        # One head-batched dot for scores, one for PV (instead of 2*H small dots).
        s = jnp.einsum("hqd,hkd->hqk", qh, kh, preferred_element_type=f32)
        s = s + mask_add[None]                               # additive mask, f32
        s = s - jnp.max(s, axis=-1, keepdims=True)
        p = jnp.exp(s)
        p = p * pl.reciprocal(jnp.sum(p, axis=-1, keepdims=True), approx=True)
        o = jnp.einsum("hqk,hkd->hqd", p.astype(cdt), vh,
                       preferred_element_type=f32)           # (H, S, hd)
        return merge_heads(o)                                # (S, D), f32

    tgt = tgt_ref[0]                 # (S, D), native dtype
    mem = mem_ref[0]                 # (M, D)
    tmask = tmask_ref[...]           # (S, S) additive f32
    mmask = mmask_ref[...]           # (S, M) additive f32

    # ---- self-attention block (dropout == identity in eval mode) ----
    qkv = mm(tgt, swqkv_ref[...]) + sbqkv_ref[...]                 # (S, 3D) f32
    att = attention(qkv[:, :D], qkv[:, D:2 * D], qkv[:, 2 * D:], tmask)
    t2 = mm(att, swo_ref[...]) + sbo_ref[...]                      # single Wo matmul
    x = layer_norm(tgt.astype(f32) + t2, lng_ref[0:1, :], lnb_ref[0:1, :])

    # ---- cross-attention block ----
    q = mm(x, cwq_ref[...]) + cbq_ref[...]                         # (S, D)
    kv = mm(mem, cwkv_ref[...]) + cbkv_ref[...]                    # (M, 2D)
    att = attention(q, kv[:, :D], kv[:, D:], mmask)
    t2 = mm(att, cwo_ref[...]) + cbo_ref[...]
    x = layer_norm(x + t2, lng_ref[1:2, :], lnb_ref[1:2, :])

    # ---- feed-forward block: Linear -> ReLU -> Linear ----
    hmid = jnp.maximum(mm(x, w1_ref[...]) + b1_ref[...], 0.0)
    t2 = mm(hmid, w2_ref[...]) + b2_ref[...]
    x = layer_norm(x + t2, lng_ref[2:3, :], lnb_ref[2:3, :])

    # NOTE: keep D a multiple of 128 at production sizes so this is a
    # lane-dense unmasked vst; the toy D=32 store is masked.
    out_ref[...] = x[None, :, :].astype(out_ref.dtype)


# ----------------------------------------------------------------------------
# Wrapper
# ----------------------------------------------------------------------------
def decoder_layer(tgt, memory, tgt_mask, memory_mask, params, *, num_heads,
                  compute_dtype=jnp.bfloat16):
    """Runs one decoder layer (eval mode).

    compute_dtype: dtype of MXU matmul operands (f32 accumulation always).
    bf16 is the production default (~2x MXU throughput on v6e/v7x, half the
    weight DMA bytes); pass jnp.float32 for a tight numerical check.
    """
    B, S, D = tgt.shape
    M = memory.shape[1]
    f32 = jnp.float32
    p = params
    hd = D // num_heads
    scale = 1.0 / math.sqrt(hd)

    # ---- wrapper-side layout plumbing (free / tiny in XLA) ----
    if tgt_mask is None:
        tgt_mask = jnp.ones((S, S), f32)
    if memory_mask is None:
        memory_mask = jnp.ones((S, M), f32)
    tmask_add = jnp.where(tgt_mask > 0, 0.0, -1e9).astype(f32)      # (S, S)
    mmask_add = jnp.where(memory_mask > 0, 0.0, -1e9).astype(f32)   # (S, M)

    # Fuse Q|K|V for self-attn, Q separate + K|V fused for cross-attn.
    # Fold the 1/sqrt(hd) softmax scale into the Q projection (zero kernel cost)
    # and cast matmul weights to compute_dtype ONCE here (halves DMA at bf16).
    swqkv = jnp.concatenate([p["self_w"][0] * scale, p["self_w"][1],
                             p["self_w"][2]], axis=1).astype(compute_dtype)
    sbqkv = jnp.concatenate([p["self_b"][0] * scale, p["self_b"][1],
                             p["self_b"][2]], axis=0).reshape(1, 3 * D).astype(f32)
    swo = p["self_w"][3].astype(compute_dtype)
    sbo = p["self_b"][3].reshape(1, D).astype(f32)

    cwq = (p["cross_w"][0] * scale).astype(compute_dtype)
    cbq = (p["cross_b"][0] * scale).reshape(1, D).astype(f32)
    cwkv = jnp.concatenate([p["cross_w"][1], p["cross_w"][2]],
                           axis=1).astype(compute_dtype)
    cbkv = jnp.concatenate([p["cross_b"][1], p["cross_b"][2]],
                           axis=0).reshape(1, 2 * D).astype(f32)
    cwo = p["cross_w"][3].astype(compute_dtype)
    cbo = p["cross_b"][3].reshape(1, D).astype(f32)

    w1 = p["w1"].astype(compute_dtype)
    b1 = p["b1"].astype(f32)
    w2 = p["w2"].astype(compute_dtype)
    b2 = p["b2"].astype(f32)
    lng = p["ln_g"].astype(f32)
    lnb = p["ln_b"].astype(f32)

    # Resident operands: constant index map -> DMA'd once, single-buffered.
    def resident(x):
        return pl.BlockSpec(x.shape, lambda b: (0,) * x.ndim)

    act_spec = pl.BlockSpec((1, S, D), lambda b: (b, 0, 0))
    mem_spec = pl.BlockSpec((1, M, D), lambda b: (b, 0, 0))
    out_spec = pl.BlockSpec((1, S, D), lambda b: (b, 0, 0))

    kernel = functools.partial(_decoder_layer_kernel, num_heads)

    grid_spec = pltpu.PrefetchScalarGridSpec(
        num_scalar_prefetch=0,
        grid=(B,),                       # batch axis, independent per step
        in_specs=[
            act_spec, mem_spec,
            resident(tmask_add), resident(mmask_add),
            resident(swqkv), resident(sbqkv), resident(swo), resident(sbo),
            resident(cwq), resident(cbq), resident(cwkv), resident(cbkv),
            resident(cwo), resident(cbo),
            resident(w1), resident(b1), resident(w2), resident(b2),
            resident(lng), resident(lnb),
        ],
        out_specs=out_spec,
    )

    out = pl.pallas_call(
        kernel,
        out_shape=jax.ShapeDtypeStruct((B, S, D), tgt.dtype),
        grid_spec=grid_spec,
        compiler_params=pltpu.CompilerParams(
            dimension_semantics=("parallel",),      # shard batch across TCs (v7x)
            vmem_limit_bytes=32 * 1024 * 1024,      # explicit; safe on v5e..v7x
        ),
    )(tgt, memory, tmask_add, mmask_add,
      swqkv, sbqkv, swo, sbo,
      cwq, cbq, cwkv, cbkv, cwo, cbo,
      w1, b1, w2, b2, lng, lnb)
    return out


# ----------------------------------------------------------------------------
# Pure-JAX reference (for verification)
# ----------------------------------------------------------------------------
def _ref_mha(q_in, kv_in, W, b, mask, num_heads):
    B, Sq, D = q_in.shape
    Sk = kv_in.shape[1]
    hd = D // num_heads
    q = q_in @ W[0] + b[0]
    k = kv_in @ W[1] + b[1]
    v = kv_in @ W[2] + b[2]
    q = q.reshape(B, Sq, num_heads, hd).transpose(0, 2, 1, 3)
    k = k.reshape(B, Sk, num_heads, hd).transpose(0, 2, 1, 3)
    v = v.reshape(B, Sk, num_heads, hd).transpose(0, 2, 1, 3)
    s = jnp.einsum("bhqd,bhkd->bhqk", q, k) / math.sqrt(hd)
    s = jnp.where(mask[None, None] > 0, s, -1e9)
    p = jax.nn.softmax(s, axis=-1)
    o = jnp.einsum("bhqk,bhkd->bhqd", p, v)
    o = o.transpose(0, 2, 1, 3).reshape(B, Sq, D)
    return o @ W[3] + b[3]


def _ref_layer_norm(x, g, b):
    mu = jnp.mean(x, axis=-1, keepdims=True)
    var = jnp.mean((x - mu) ** 2, axis=-1, keepdims=True)
    return (x - mu) * jax.lax.rsqrt(var + 1e-5) * g + b


def ref_decoder_layer(tgt, memory, tmask, mmask, p, *, num_heads):
    t2 = _ref_mha(tgt, tgt, p["self_w"], p["self_b"], tmask, num_heads)
    x = _ref_layer_norm(tgt + t2, p["ln_g"][0], p["ln_b"][0])
    t2 = _ref_mha(x, memory, p["cross_w"], p["cross_b"], mmask, num_heads)
    x = _ref_layer_norm(x + t2, p["ln_g"][1], p["ln_b"][1])
    h = jnp.maximum(x @ p["w1"] + p["b1"][0], 0.0)
    t2 = h @ p["w2"] + p["b2"][0]
    x = _ref_layer_norm(x + t2, p["ln_g"][2], p["ln_b"][2])
    return x


# ----------------------------------------------------------------------------
# Main
# ----------------------------------------------------------------------------
if __name__ == "__main__":
    B, S, M, D, H, F = 2, 8, 8, 32, 4, 64

    key = jax.random.PRNGKey(0)
    ks = jax.random.split(key, 16)

    tgt = jax.random.normal(ks[0], (B, S, D), jnp.float32)
    memory = jax.random.normal(ks[1], (B, M, D), jnp.float32)

    # causal self-attention mask; full visibility on memory
    tgt_mask = jnp.tril(jnp.ones((S, S), jnp.float32))
    memory_mask = jnp.ones((S, M), jnp.float32)

    def nrm(k, shape, scale=0.05):
        return scale * jax.random.normal(k, shape, jnp.float32)

    params = {
        "self_w": nrm(ks[2], (4, D, D)),
        "self_b": nrm(ks[3], (4, D)),
        "cross_w": nrm(ks[4], (4, D, D)),
        "cross_b": nrm(ks[5], (4, D)),
        "w1": nrm(ks[6], (D, F)),
        "b1": nrm(ks[7], (1, F)),
        "w2": nrm(ks[8], (F, D)),
        "b2": nrm(ks[9], (1, D)),
        "ln_g": jnp.ones((3, D), jnp.float32),
        "ln_b": jnp.zeros((3, D), jnp.float32),
    }

    ref = ref_decoder_layer(tgt, memory, tgt_mask, memory_mask, params,
                            num_heads=H)

    # Production path: bf16 matmul operands, f32 accumulation / norms.
    out_bf16 = decoder_layer(tgt, memory, tgt_mask, memory_mask, params,
                             num_heads=H, compute_dtype=jnp.bfloat16)
    out_bf16 = jax.block_until_ready(out_bf16)
    assert out_bf16.shape == (B, S, D)
    assert jnp.allclose(out_bf16, ref, rtol=3e-2, atol=3e-2), "bf16 mismatch"

    # Tight numerical check with f32 operands (approx-reciprocal softmax only).
    out_f32 = decoder_layer(tgt, memory, tgt_mask, memory_mask, params,
                            num_heads=H, compute_dtype=jnp.float32)
    out_f32 = jax.block_until_ready(out_f32)
    assert jnp.allclose(out_f32, ref, rtol=5e-3, atol=5e-3), "f32 mismatch"

    print("KERNEL_OK")
</pallas_src>

<mosaic_0001>
module attributes {stable_mosaic.version = 11 : i64} {
  func.func @_decoder_layer_kernel(%arg0: i32, %arg1: memref<1x8x32xf32, #tpu.memory_space<vmem>>, %arg2: memref<1x8x32xf32, #tpu.memory_space<vmem>>, %arg3: memref<8x8xf32, #tpu.memory_space<vmem>>, %arg4: memref<8x8xf32, #tpu.memory_space<vmem>>, %arg5: memref<32x96xbf16, #tpu.memory_space<vmem>>, %arg6: memref<1x96xf32, #tpu.memory_space<vmem>>, %arg7: memref<32x32xbf16, #tpu.memory_space<vmem>>, %arg8: memref<1x32xf32, #tpu.memory_space<vmem>>, %arg9: memref<32x32xbf16, #tpu.memory_space<vmem>>, %arg10: memref<1x32xf32, #tpu.memory_space<vmem>>, %arg11: memref<32x64xbf16, #tpu.memory_space<vmem>>, %arg12: memref<1x64xf32, #tpu.memory_space<vmem>>, %arg13: memref<32x32xbf16, #tpu.memory_space<vmem>>, %arg14: memref<1x32xf32, #tpu.memory_space<vmem>>, %arg15: memref<32x64xbf16, #tpu.memory_space<vmem>>, %arg16: memref<1x64xf32, #tpu.memory_space<vmem>>, %arg17: memref<64x32xbf16, #tpu.memory_space<vmem>>, %arg18: memref<1x32xf32, #tpu.memory_space<vmem>>, %arg19: memref<3x32xf32, #tpu.memory_space<vmem>>, %arg20: memref<3x32xf32, #tpu.memory_space<vmem>>, %arg21: memref<1x8x32xf32, #tpu.memory_space<vmem>>) attributes {dimension_semantics = [#tpu.dimension_semantics<parallel>], iteration_bounds = array<i64: 2>, scalar_prefetch = 0 : i64, scratch_operands = 0 : i64, tpu.core_type = #tpu.core_type<tc>, window_params = [{transform_indices = @transform_0, window_bounds = array<i64: 1, 8, 32>}, {transform_indices = @transform_1, window_bounds = array<i64: 1, 8, 32>}, {pipeline_mode = #tpu.pipeline_mode<synchronous>, transform_indices = @transform_2, window_bounds = array<i64: 8, 8>}, {pipeline_mode = #tpu.pipeline_mode<synchronous>, transform_indices = @transform_3, window_bounds = array<i64: 8, 8>}, {pipeline_mode = #tpu.pipeline_mode<synchronous>, transform_indices = @transform_4, window_bounds = array<i64: 32, 96>}, {pipeline_mode = #tpu.pipeline_mode<synchronous>, transform_indices = @transform_5, window_bounds = array<i64: 1, 96>}, {pipeline_mode = #tpu.pipeline_mode<synchronous>, transform_indices = @transform_6, window_bounds = array<i64: 32, 32>}, {pipeline_mode = #tpu.pipeline_mode<synchronous>, transform_indices = @transform_7, window_bounds = array<i64: 1, 32>}, {pipeline_mode = #tpu.pipeline_mode<synchronous>, transform_indices = @transform_8, window_bounds = array<i64: 32, 32>}, {pipeline_mode = #tpu.pipeline_mode<synchronous>, transform_indices = @transform_9, window_bounds = array<i64: 1, 32>}, {pipeline_mode = #tpu.pipeline_mode<synchronous>, transform_indices = @transform_10, window_bounds = array<i64: 32, 64>}, {pipeline_mode = #tpu.pipeline_mode<synchronous>, transform_indices = @transform_11, window_bounds = array<i64: 1, 64>}, {pipeline_mode = #tpu.pipeline_mode<synchronous>, transform_indices = @transform_12, window_bounds = array<i64: 32, 32>}, {pipeline_mode = #tpu.pipeline_mode<synchronous>, transform_indices = @transform_13, window_bounds = array<i64: 1, 32>}, {pipeline_mode = #tpu.pipeline_mode<synchronous>, transform_indices = @transform_14, window_bounds = array<i64: 32, 64>}, {pipeline_mode = #tpu.pipeline_mode<synchronous>, transform_indices = @transform_15, window_bounds = array<i64: 1, 64>}, {pipeline_mode = #tpu.pipeline_mode<synchronous>, transform_indices = @transform_16, window_bounds = array<i64: 64, 32>}, {pipeline_mode = #tpu.pipeline_mode<synchronous>, transform_indices = @transform_17, window_bounds = array<i64: 1, 32>}, {pipeline_mode = #tpu.pipeline_mode<synchronous>, transform_indices = @transform_18, window_bounds = array<i64: 3, 32>}, {pipeline_mode = #tpu.pipeline_mode<synchronous>, transform_indices = @transform_19, window_bounds = array<i64: 3, 32>}, {transform_indices = @transform_20, window_bounds = array<i64: 1, 8, 32>}]} {
    %c0 = arith.constant 0 : index
    %c0_0 = arith.constant 0 : index
    %c0_1 = arith.constant 0 : index
    %0 = vector.load %arg1[%c0, %c0_0, %c0_1] : memref<1x8x32xf32, #tpu.memory_space<vmem>>, vector<1x8x32xf32>
    %1 = vector.shape_cast %0 : vector<1x8x32xf32> to vector<8x32xf32>
    %c0_2 = arith.constant 0 : index
    %c0_3 = arith.constant 0 : index
    %c0_4 = arith.constant 0 : index
    %2 = vector.load %arg2[%c0_2, %c0_3, %c0_4] : memref<1x8x32xf32, #tpu.memory_space<vmem>>, vector<1x8x32xf32>
    %3 = vector.shape_cast %2 : vector<1x8x32xf32> to vector<8x32xf32>
    %c0_5 = arith.constant 0 : index
    %c0_6 = arith.constant 0 : index
    %4 = vector.load %arg3[%c0_5, %c0_6] : memref<8x8xf32, #tpu.memory_space<vmem>>, vector<8x8xf32>
    %c0_7 = arith.constant 0 : index
    %c0_8 = arith.constant 0 : index
    %5 = vector.load %arg4[%c0_7, %c0_8] : memref<8x8xf32, #tpu.memory_space<vmem>>, vector<8x8xf32>
    %c0_9 = arith.constant 0 : index
    %c0_10 = arith.constant 0 : index
    %6 = vector.load %arg5[%c0_9, %c0_10] : memref<32x96xbf16, #tpu.memory_space<vmem>>, vector<32x96xbf16>
    %7 = arith.truncf %1 : vector<8x32xf32> to vector<8x32xbf16>
    %cst = arith.constant dense<0.000000e+00> : vector<8x96xf32>
    %8 = tpu.matmul %7, %6, %cst {dimension_numbers = #tpu.dot_dimension_numbers<[1], [0], [0], [1], [0, 0, 1, 1], [], []>} : vector<8x32xbf16>, vector<32x96xbf16>, vector<8x96xf32> -> vector<8x96xf32>
    %c0_11 = arith.constant 0 : index
    %c0_12 = arith.constant 0 : index
    %9 = vector.load %arg6[%c0_11, %c0_12] : memref<1x96xf32, #tpu.memory_space<vmem>>, vector<1x96xf32>
    %10 = vector.broadcast %9 : vector<1x96xf32> to vector<8x96xf32>
    %11 = arith.addf %8, %10 : vector<8x96xf32>
    %12 = vector.extract_strided_slice %11 {offsets = [0, 0], sizes = [8, 32], strides = [1, 1]} : vector<8x96xf32> to vector<8x32xf32>
    %13 = vector.extract_strided_slice %11 {offsets = [0, 32], sizes = [8, 32], strides = [1, 1]} : vector<8x96xf32> to vector<8x32xf32>
    %14 = vector.extract_strided_slice %11 {offsets = [0, 64], sizes = [8, 32], strides = [1, 1]} : vector<8x96xf32> to vector<8x32xf32>
    %15 = arith.truncf %12 : vector<8x32xf32> to vector<8x32xbf16>
    %16 = vector.extract_strided_slice %15 {offsets = [0, 0], sizes = [8, 8], strides = [1, 1]} : vector<8x32xbf16> to vector<8x8xbf16>
    %17 = vector.extract_strided_slice %15 {offsets = [0, 8], sizes = [8, 8], strides = [1, 1]} : vector<8x32xbf16> to vector<8x8xbf16>
    %18 = vector.extract_strided_slice %15 {offsets = [0, 16], sizes = [8, 8], strides = [1, 1]} : vector<8x32xbf16> to vector<8x8xbf16>
    %19 = vector.extract_strided_slice %15 {offsets = [0, 24], sizes = [8, 8], strides = [1, 1]} : vector<8x32xbf16> to vector<8x8xbf16>
    %20 = vector.shape_cast %16 : vector<8x8xbf16> to vector<1x8x8xbf16>
    %21 = vector.shape_cast %17 : vector<8x8xbf16> to vector<1x8x8xbf16>
    %22 = vector.shape_cast %18 : vector<8x8xbf16> to vector<1x8x8xbf16>
    %23 = vector.shape_cast %19 : vector<8x8xbf16> to vector<1x8x8xbf16>
    %24 = tpu.concatenate %20, %21, %22, %23 in 0 : vector<1x8x8xbf16>, vector<1x8x8xbf16>, vector<1x8x8xbf16>, vector<1x8x8xbf16> -> vector<4x8x8xbf16>
    %25 = arith.truncf %13 : vector<8x32xf32> to vector<8x32xbf16>
    %26 = vector.extract_strided_slice %25 {offsets = [0, 0], sizes = [8, 8], strides = [1, 1]} : vector<8x32xbf16> to vector<8x8xbf16>
    %27 = vector.extract_strided_slice %25 {offsets = [0, 8], sizes = [8, 8], strides = [1, 1]} : vector<8x32xbf16> to vector<8x8xbf16>
    %28 = vector.extract_strided_slice %25 {offsets = [0, 16], sizes = [8, 8], strides = [1, 1]} : vector<8x32xbf16> to vector<8x8xbf16>
    %29 = vector.extract_strided_slice %25 {offsets = [0, 24], sizes = [8, 8], strides = [1, 1]} : vector<8x32xbf16> to vector<8x8xbf16>
    %30 = vector.shape_cast %26 : vector<8x8xbf16> to vector<1x8x8xbf16>
    %31 = vector.shape_cast %27 : vector<8x8xbf16> to vector<1x8x8xbf16>
    %32 = vector.shape_cast %28 : vector<8x8xbf16> to vector<1x8x8xbf16>
    %33 = vector.shape_cast %29 : vector<8x8xbf16> to vector<1x8x8xbf16>
    %34 = tpu.concatenate %30, %31, %32, %33 in 0 : vector<1x8x8xbf16>, vector<1x8x8xbf16>, vector<1x8x8xbf16>, vector<1x8x8xbf16> -> vector<4x8x8xbf16>
    %35 = arith.truncf %14 : vector<8x32xf32> to vector<8x32xbf16>
    %36 = vector.extract_strided_slice %35 {offsets = [0, 0], sizes = [8, 8], strides = [1, 1]} : vector<8x32xbf16> to vector<8x8xbf16>
    %37 = vector.extract_strided_slice %35 {offsets = [0, 8], sizes = [8, 8], strides = [1, 1]} : vector<8x32xbf16> to vector<8x8xbf16>
    %38 = vector.extract_strided_slice %35 {offsets = [0, 16], sizes = [8, 8], strides = [1, 1]} : vector<8x32xbf16> to vector<8x8xbf16>
    %39 = vector.extract_strided_slice %35 {offsets = [0, 24], sizes = [8, 8], strides = [1, 1]} : vector<8x32xbf16> to vector<8x8xbf16>
    %40 = vector.shape_cast %36 : vector<8x8xbf16> to vector<1x8x8xbf16>
    %41 = vector.shape_cast %37 : vector<8x8xbf16> to vector<1x8x8xbf16>
    %42 = vector.shape_cast %38 : vector<8x8xbf16> to vector<1x8x8xbf16>
    %43 = vector.shape_cast %39 : vector<8x8xbf16> to vector<1x8x8xbf16>
    %44 = tpu.concatenate %40, %41, %42, %43 in 0 : vector<1x8x8xbf16>, vector<1x8x8xbf16>, vector<1x8x8xbf16>, vector<1x8x8xbf16> -> vector<4x8x8xbf16>
    "tpu.trace_start"() <{level = 10 : i32, message = "hqd,hkd->hqk"}> : () -> ()
    %cst_13 = arith.constant dense<0.000000e+00> : vector<4x8x8xf32>
    %45 = tpu.matmul %24, %34, %cst_13 {dimension_numbers = #tpu.dot_dimension_numbers<[2], [2], [1], [1], [0, 0, 0, 1, 1, 1], [0], [0]>} : vector<4x8x8xbf16>, vector<4x8x8xbf16>, vector<4x8x8xf32> -> vector<4x8x8xf32>
    "tpu.trace_stop"() : () -> ()
    %46 = vector.shape_cast %4 : vector<8x8xf32> to vector<1x8x8xf32>
    %47 = vector.broadcast %46 : vector<1x8x8xf32> to vector<4x8x8xf32>
    %48 = arith.addf %45, %47 : vector<4x8x8xf32>
    %cst_14 = arith.constant dense<0xFF800000> : vector<4x8xf32>
    %49 = vector.multi_reduction <maximumf>, %48, %cst_14 [2] : vector<4x8x8xf32> to vector<4x8xf32>
    %50 = vector.shape_cast %49 : vector<4x8xf32> to vector<4x8x1xf32>
    %51 = vector.broadcast %50 : vector<4x8x1xf32> to vector<4x8x8xf32>
    %52 = arith.subf %48, %51 : vector<4x8x8xf32>
    %53 = math.exp %52 : vector<4x8x8xf32>
    %cst_15 = arith.constant dense<0.000000e+00> : vector<4x8xf32>
    %54 = vector.multi_reduction <add>, %53, %cst_15 [2] : vector<4x8x8xf32> to vector<4x8xf32>
    %55 = vector.shape_cast %54 : vector<4x8xf32> to vector<4x8x1xf32>
    %56 = tpu.reciprocal %55 {approx = true} : vector<4x8x1xf32> -> vector<4x8x1xf32>
    %57 = vector.broadcast %56 : vector<4x8x1xf32> to vector<4x8x8xf32>
    %58 = arith.mulf %53, %57 : vector<4x8x8xf32>
    %59 = arith.truncf %58 : vector<4x8x8xf32> to vector<4x8x8xbf16>
    "tpu.trace_start"() <{level = 10 : i32, message = "hqk,hkd->hqd"}> : () -> ()
    %cst_16 = arith.constant dense<0.000000e+00> : vector<4x8x8xf32>
    %60 = tpu.matmul %59, %44, %cst_16 {dimension_numbers = #tpu.dot_dimension_numbers<[2], [1], [1], [2], [0, 0, 0, 1, 1, 2], [0], [0]>} : vector<4x8x8xbf16>, vector<4x8x8xbf16>, vector<4x8x8xf32> -> vector<4x8x8xf32>
    "tpu.trace_stop"() : () -> ()
    %61 = vector.extract_strided_slice %60 {offsets = [0, 0, 0], sizes = [1, 8, 8], strides = [1, 1, 1]} : vector<4x8x8xf32> to vector<1x8x8xf32>
    %62 = vector.shape_cast %61 : vector<1x8x8xf32> to vector<8x8xf32>
    %63 = vector.extract_strided_slice %60 {offsets = [1, 0, 0], sizes = [1, 8, 8], strides = [1, 1, 1]} : vector<4x8x8xf32> to vector<1x8x8xf32>
    %64 = vector.shape_cast %63 : vector<1x8x8xf32> to vector<8x8xf32>
    %65 = vector.extract_strided_slice %60 {offsets = [2, 0, 0], sizes = [1, 8, 8], strides = [1, 1, 1]} : vector<4x8x8xf32> to vector<1x8x8xf32>
    %66 = vector.shape_cast %65 : vector<1x8x8xf32> to vector<8x8xf32>
    %67 = vector.extract_strided_slice %60 {offsets = [3, 0, 0], sizes = [1, 8, 8], strides = [1, 1, 1]} : vector<4x8x8xf32> to vector<1x8x8xf32>
    %68 = vector.shape_cast %67 : vector<1x8x8xf32> to vector<8x8xf32>
    %69 = tpu.concatenate %62, %64, %66, %68 in 1 : vector<8x8xf32>, vector<8x8xf32>, vector<8x8xf32>, vector<8x8xf32> -> vector<8x32xf32>
    %c0_17 = arith.constant 0 : index
    %c0_18 = arith.constant 0 : index
    %70 = vector.load %arg7[%c0_17, %c0_18] : memref<32x32xbf16, #tpu.memory_space<vmem>>, vector<32x32xbf16>
    %71 = arith.truncf %69 : vector<8x32xf32> to vector<8x32xbf16>
    %cst_19 = arith.constant dense<0.000000e+00> : vector<8x32xf32>
    %72 = tpu.matmul %71, %70, %cst_19 {dimension_numbers = #tpu.dot_dimension_numbers<[1], [0], [0], [1], [0, 0, 1, 1], [], []>} : vector<8x32xbf16>, vector<32x32xbf16>, vector<8x32xf32> -> vector<8x32xf32>
    %c0_20 = arith.constant 0 : index
    %c0_21 = arith.constant 0 : index
    %73 = vector.load %arg8[%c0_20, %c0_21] : memref<1x32xf32, #tpu.memory_space<vmem>>, vector<1x32xf32>
    %74 = vector.broadcast %73 : vector<1x32xf32> to vector<8x32xf32>
    %75 = arith.addf %72, %74 : vector<8x32xf32>
    %76 = arith.addf %1, %75 : vector<8x32xf32>
    %c0_22 = arith.constant 0 : index
    %c0_23 = arith.constant 0 : index
    %77 = vector.load %arg19[%c0_22, %c0_23] : memref<3x32xf32, #tpu.memory_space<vmem>>, vector<1x32xf32>
    %c0_24 = arith.constant 0 : index
    %c0_25 = arith.constant 0 : index
    %78 = vector.load %arg20[%c0_24, %c0_25] : memref<3x32xf32, #tpu.memory_space<vmem>>, vector<1x32xf32>
    %cst_26 = arith.constant dense<0.000000e+00> : vector<8xf32>
    %79 = vector.multi_reduction <add>, %76, %cst_26 [1] : vector<8x32xf32> to vector<8xf32>
    %80 = vector.shape_cast %79 : vector<8xf32> to vector<8x1xf32>
    %cst_27 = arith.constant 3.200000e+01 : f32
    %81 = vector.broadcast %cst_27 : f32 to vector<8x1xf32>
    %82 = arith.divf %80, %81 : vector<8x1xf32>
    %83 = vector.broadcast %82 : vector<8x1xf32> to vector<8x32xf32>
    %84 = arith.subf %76, %83 : vector<8x32xf32>
    %85 = arith.mulf %84, %84 : vector<8x32xf32>
    %cst_28 = arith.constant dense<0.000000e+00> : vector<8xf32>
    %86 = vector.multi_reduction <add>, %85, %cst_28 [1] : vector<8x32xf32> to vector<8xf32>
    %87 = vector.shape_cast %86 : vector<8xf32> to vector<8x1xf32>
    %cst_29 = arith.constant 3.200000e+01 : f32
    %88 = vector.broadcast %cst_29 : f32 to vector<8x1xf32>
    %89 = arith.divf %87, %88 : vector<8x1xf32>
    %cst_30 = arith.constant 9.99999974E-6 : f32
    %90 = vector.broadcast %cst_30 : f32 to vector<8x1xf32>
    %91 = arith.addf %89, %90 : vector<8x1xf32>
    %92 = math.rsqrt %91 : vector<8x1xf32>
    %93 = vector.broadcast %92 : vector<8x1xf32> to vector<8x32xf32>
    %94 = arith.mulf %84, %93 : vector<8x32xf32>
    %95 = vector.broadcast %77 : vector<1x32xf32> to vector<8x32xf32>
    %96 = arith.mulf %94, %95 : vector<8x32xf32>
    %97 = vector.broadcast %78 : vector<1x32xf32> to vector<8x32xf32>
    %98 = arith.addf %96, %97 : vector<8x32xf32>
    %c0_31 = arith.constant 0 : index
    %c0_32 = arith.constant 0 : index
    %99 = vector.load %arg9[%c0_31, %c0_32] : memref<32x32xbf16, #tpu.memory_space<vmem>>, vector<32x32xbf16>
    %100 = arith.truncf %98 : vector<8x32xf32> to vector<8x32xbf16>
    %cst_33 = arith.constant dense<0.000000e+00> : vector<8x32xf32>
    %101 = tpu.matmul %100, %99, %cst_33 {dimension_numbers = #tpu.dot_dimension_numbers<[1], [0], [0], [1], [0, 0, 1, 1], [], []>} : vector<8x32xbf16>, vector<32x32xbf16>, vector<8x32xf32> -> vector<8x32xf32>
    %c0_34 = arith.constant 0 : index
    %c0_35 = arith.constant 0 : index
    %102 = vector.load %arg10[%c0_34, %c0_35] : memref<1x32xf32, #tpu.memory_space<vmem>>, vector<1x32xf32>
    %103 = vector.broadcast %102 : vector<1x32xf32> to vector<8x32xf32>
    %104 = arith.addf %101, %103 : vector<8x32xf32>
    %c0_36 = arith.constant 0 : index
    %c0_37 = arith.constant 0 : index
    %105 = vector.load %arg11[%c0_36, %c0_37] : memref<32x64xbf16, #tpu.memory_space<vmem>>, vector<32x64xbf16>
    %106 = arith.truncf %3 : vector<8x32xf32> to vector<8x32xbf16>
    %cst_38 = arith.constant dense<0.000000e+00> : vector<8x64xf32>
    %107 = tpu.matmul %106, %105, %cst_38 {dimension_numbers = #tpu.dot_dimension_numbers<[1], [0], [0], [1], [0, 0, 1, 1], [], []>} : vector<8x32xbf16>, vector<32x64xbf16>, vector<8x64xf32> -> vector<8x64xf32>
    %c0_39 = arith.constant 0 : index
    %c0_40 = arith.constant 0 : index
    %108 = vector.load %arg12[%c0_39, %c0_40] : memref<1x64xf32, #tpu.memory_space<vmem>>, vector<1x64xf32>
    %109 = vector.broadcast %108 : vector<1x64xf32> to vector<8x64xf32>
    %110 = arith.addf %107, %109 : vector<8x64xf32>
    %111 = vector.extract_strided_slice %110 {offsets = [0, 0], sizes = [8, 32], strides = [1, 1]} : vector<8x64xf32> to vector<8x32xf32>
    %112 = vector.extract_strided_slice %110 {offsets = [0, 32], sizes = [8, 32], strides = [1, 1]} : vector<8x64xf32> to vector<8x32xf32>
    %113 = arith.truncf %104 : vector<8x32xf32> to vector<8x32xbf16>
    %114 = vector.extract_strided_slice %113 {offsets = [0, 0], sizes = [8, 8], strides = [1, 1]} : vector<8x32xbf16> to vector<8x8xbf16>
    %115 = vector.extract_strided_slice %113 {offsets = [0, 8], sizes = [8, 8], strides = [1, 1]} : vector<8x32xbf16> to vector<8x8xbf16>
    %116 = vector.extract_strided_slice %113 {offsets = [0, 16], sizes = [8, 8], strides = [1, 1]} : vector<8x32xbf16> to vector<8x8xbf16>
    %117 = vector.extract_strided_slice %113 {offsets = [0, 24], sizes = [8, 8], strides = [1, 1]} : vector<8x32xbf16> to vector<8x8xbf16>
    %118 = vector.shape_cast %114 : vector<8x8xbf16> to vector<1x8x8xbf16>
    %119 = vector.shape_cast %115 : vector<8x8xbf16> to vector<1x8x8xbf16>
    %120 = vector.shape_cast %116 : vector<8x8xbf16> to vector<1x8x8xbf16>
    %121 = vector.shape_cast %117 : vector<8x8xbf16> to vector<1x8x8xbf16>
    %122 = tpu.concatenate %118, %119, %120, %121 in 0 : vector<1x8x8xbf16>, vector<1x8x8xbf16>, vector<1x8x8xbf16>, vector<1x8x8xbf16> -> vector<4x8x8xbf16>
    %123 = arith.truncf %111 : vector<8x32xf32> to vector<8x32xbf16>
    %124 = vector.extract_strided_slice %123 {offsets = [0, 0], sizes = [8, 8], strides = [1, 1]} : vector<8x32xbf16> to vector<8x8xbf16>
    %125 = vector.extract_strided_slice %123 {offsets = [0, 8], sizes = [8, 8], strides = [1, 1]} : vector<8x32xbf16> to vector<8x8xbf16>
    %126 = vector.extract_strided_slice %123 {offsets = [0, 16], sizes = [8, 8], strides = [1, 1]} : vector<8x32xbf16> to vector<8x8xbf16>
    %127 = vector.extract_strided_slice %123 {offsets = [0, 24], sizes = [8, 8], strides = [1, 1]} : vector<8x32xbf16> to vector<8x8xbf16>
    %128 = vector.shape_cast %124 : vector<8x8xbf16> to vector<1x8x8xbf16>
    %129 = vector.shape_cast %125 : vector<8x8xbf16> to vector<1x8x8xbf16>
    %130 = vector.shape_cast %126 : vector<8x8xbf16> to vector<1x8x8xbf16>
    %131 = vector.shape_cast %127 : vector<8x8xbf16> to vector<1x8x8xbf16>
    %132 = tpu.concatenate %128, %129, %130, %131 in 0 : vector<1x8x8xbf16>, vector<1x8x8xbf16>, vector<1x8x8xbf16>, vector<1x8x8xbf16> -> vector<4x8x8xbf16>
    %133 = arith.truncf %112 : vector<8x32xf32> to vector<8x32xbf16>
    %134 = vector.extract_strided_slice %133 {offsets = [0, 0], sizes = [8, 8], strides = [1, 1]} : vector<8x32xbf16> to vector<8x8xbf16>
    %135 = vector.extract_strided_slice %133 {offsets = [0, 8], sizes = [8, 8], strides = [1, 1]} : vector<8x32xbf16> to vector<8x8xbf16>
    %136 = vector.extract_strided_slice %133 {offsets = [0, 16], sizes = [8, 8], strides = [1, 1]} : vector<8x32xbf16> to vector<8x8xbf16>
    %137 = vector.extract_strided_slice %133 {offsets = [0, 24], sizes = [8, 8], strides = [1, 1]} : vector<8x32xbf16> to vector<8x8xbf16>
    %138 = vector.shape_cast %134 : vector<8x8xbf16> to vector<1x8x8xbf16>
    %139 = vector.shape_cast %135 : vector<8x8xbf16> to vector<1x8x8xbf16>
    %140 = vector.shape_cast %136 : vector<8x8xbf16> to vector<1x8x8xbf16>
    %141 = vector.shape_cast %137 : vector<8x8xbf16> to vector<1x8x8xbf16>
    %142 = tpu.concatenate %138, %139, %140, %141 in 0 : vector<1x8x8xbf16>, vector<1x8x8xbf16>, vector<1x8x8xbf16>, vector<1x8x8xbf16> -> vector<4x8x8xbf16>
    "tpu.trace_start"() <{level = 10 : i32, message = "hqd,hkd->hqk"}> : () -> ()
    %cst_41 = arith.constant dense<0.000000e+00> : vector<4x8x8xf32>
    %143 = tpu.matmul %122, %132, %cst_41 {dimension_numbers = #tpu.dot_dimension_numbers<[2], [2], [1], [1], [0, 0, 0, 1, 1, 1], [0], [0]>} : vector<4x8x8xbf16>, vector<4x8x8xbf16>, vector<4x8x8xf32> -> vector<4x8x8xf32>
    "tpu.trace_stop"() : () -> ()
    %144 = vector.shape_cast %5 : vector<8x8xf32> to vector<1x8x8xf32>
    %145 = vector.broadcast %144 : vector<1x8x8xf32> to vector<4x8x8xf32>
    %146 = arith.addf %143, %145 : vector<4x8x8xf32>
    %cst_42 = arith.constant dense<0xFF800000> : vector<4x8xf32>
    %147 = vector.multi_reduction <maximumf>, %146, %cst_42 [2] : vector<4x8x8xf32> to vector<4x8xf32>
    %148 = vector.shape_cast %147 : vector<4x8xf32> to vector<4x8x1xf32>
    %149 = vector.broadcast %148 : vector<4x8x1xf32> to vector<4x8x8xf32>
    %150 = arith.subf %146, %149 : vector<4x8x8xf32>
    %151 = math.exp %150 : vector<4x8x8xf32>
    %cst_43 = arith.constant dense<0.000000e+00> : vector<4x8xf32>
    %152 = vector.multi_reduction <add>, %151, %cst_43 [2] : vector<4x8x8xf32> to vector<4x8xf32>
    %153 = vector.shape_cast %152 : vector<4x8xf32> to vector<4x8x1xf32>
    %154 = tpu.reciprocal %153 {approx = true} : vector<4x8x1xf32> -> vector<4x8x1xf32>
    %155 = vector.broadcast %154 : vector<4x8x1xf32> to vector<4x8x8xf32>
    %156 = arith.mulf %151, %155 : vector<4x8x8xf32>
    %157 = arith.truncf %156 : vector<4x8x8xf32> to vector<4x8x8xbf16>
    "tpu.trace_start"() <{level = 10 : i32, message = "hqk,hkd->hqd"}> : () -> ()
    %cst_44 = arith.constant dense<0.000000e+00> : vector<4x8x8xf32>
    %158 = tpu.matmul %157, %142, %cst_44 {dimension_numbers = #tpu.dot_dimension_numbers<[2], [1], [1], [2], [0, 0, 0, 1, 1, 2], [0], [0]>} : vector<4x8x8xbf16>, vector<4x8x8xbf16>, vector<4x8x8xf32> -> vector<4x8x8xf32>
    "tpu.trace_stop"() : () -> ()
    %159 = vector.extract_strided_slice %158 {offsets = [0, 0, 0], sizes = [1, 8, 8], strides = [1, 1, 1]} : vector<4x8x8xf32> to vector<1x8x8xf32>
    %160 = vector.shape_cast %159 : vector<1x8x8xf32> to vector<8x8xf32>
    %161 = vector.extract_strided_slice %158 {offsets = [1, 0, 0], sizes = [1, 8, 8], strides = [1, 1, 1]} : vector<4x8x8xf32> to vector<1x8x8xf32>
    %162 = vector.shape_cast %161 : vector<1x8x8xf32> to vector<8x8xf32>
    %163 = vector.extract_strided_slice %158 {offsets = [2, 0, 0], sizes = [1, 8, 8], strides = [1, 1, 1]} : vector<4x8x8xf32> to vector<1x8x8xf32>
    %164 = vector.shape_cast %163 : vector<1x8x8xf32> to vector<8x8xf32>
    %165 = vector.extract_strided_slice %158 {offsets = [3, 0, 0], sizes = [1, 8, 8], strides = [1, 1, 1]} : vector<4x8x8xf32> to vector<1x8x8xf32>
    %166 = vector.shape_cast %165 : vector<1x8x8xf32> to vector<8x8xf32>
    %167 = tpu.concatenate %160, %162, %164, %166 in 1 : vector<8x8xf32>, vector<8x8xf32>, vector<8x8xf32>, vector<8x8xf32> -> vector<8x32xf32>
    %c0_45 = arith.constant 0 : index
    %c0_46 = arith.constant 0 : index
    %168 = vector.load %arg13[%c0_45, %c0_46] : memref<32x32xbf16, #tpu.memory_space<vmem>>, vector<32x32xbf16>
    %169 = arith.truncf %167 : vector<8x32xf32> to vector<8x32xbf16>
    %cst_47 = arith.constant dense<0.000000e+00> : vector<8x32xf32>
    %170 = tpu.matmul %169, %168, %cst_47 {dimension_numbers = #tpu.dot_dimension_numbers<[1], [0], [0], [1], [0, 0, 1, 1], [], []>} : vector<8x32xbf16>, vector<32x32xbf16>, vector<8x32xf32> -> vector<8x32xf32>
    %c0_48 = arith.constant 0 : index
    %c0_49 = arith.constant 0 : index
    %171 = vector.load %arg14[%c0_48, %c0_49] : memref<1x32xf32, #tpu.memory_space<vmem>>, vector<1x32xf32>
    %172 = vector.broadcast %171 : vector<1x32xf32> to vector<8x32xf32>
    %173 = arith.addf %170, %172 : vector<8x32xf32>
    %174 = arith.addf %98, %173 : vector<8x32xf32>
    %c1 = arith.constant 1 : index
    %c0_50 = arith.constant 0 : index
    %175 = vector.load %arg19[%c1, %c0_50] : memref<3x32xf32, #tpu.memory_space<vmem>>, vector<1x32xf32>
    %c1_51 = arith.constant 1 : index
    %c0_52 = arith.constant 0 : index
    %176 = vector.load %arg20[%c1_51, %c0_52] : memref<3x32xf32, #tpu.memory_space<vmem>>, vector<1x32xf32>
    %cst_53 = arith.constant dense<0.000000e+00> : vector<8xf32>
    %177 = vector.multi_reduction <add>, %174, %cst_53 [1] : vector<8x32xf32> to vector<8xf32>
    %178 = vector.shape_cast %177 : vector<8xf32> to vector<8x1xf32>
    %cst_54 = arith.constant 3.200000e+01 : f32
    %179 = vector.broadcast %cst_54 : f32 to vector<8x1xf32>
    %180 = arith.divf %178, %179 : vector<8x1xf32>
    %181 = vector.broadcast %180 : vector<8x1xf32> to vector<8x32xf32>
    %182 = arith.subf %174, %181 : vector<8x32xf32>
    %183 = arith.mulf %182, %182 : vector<8x32xf32>
    %cst_55 = arith.constant dense<0.000000e+00> : vector<8xf32>
    %184 = vector.multi_reduction <add>, %183, %cst_55 [1] : vector<8x32xf32> to vector<8xf32>
    %185 = vector.shape_cast %184 : vector<8xf32> to vector<8x1xf32>
    %cst_56 = arith.constant 3.200000e+01 : f32
    %186 = vector.broadcast %cst_56 : f32 to vector<8x1xf32>
    %187 = arith.divf %185, %186 : vector<8x1xf32>
    %cst_57 = arith.constant 9.99999974E-6 : f32
    %188 = vector.broadcast %cst_57 : f32 to vector<8x1xf32>
    %189 = arith.addf %187, %188 : vector<8x1xf32>
    %190 = math.rsqrt %189 : vector<8x1xf32>
    %191 = vector.broadcast %190 : vector<8x1xf32> to vector<8x32xf32>
    %192 = arith.mulf %182, %191 : vector<8x32xf32>
    %193 = vector.broadcast %175 : vector<1x32xf32> to vector<8x32xf32>
    %194 = arith.mulf %192, %193 : vector<8x32xf32>
    %195 = vector.broadcast %176 : vector<1x32xf32> to vector<8x32xf32>
    %196 = arith.addf %194, %195 : vector<8x32xf32>
    %c0_58 = arith.constant 0 : index
    %c0_59 = arith.constant 0 : index
    %197 = vector.load %arg15[%c0_58, %c0_59] : memref<32x64xbf16, #tpu.memory_space<vmem>>, vector<32x64xbf16>
    %198 = arith.truncf %196 : vector<8x32xf32> to vector<8x32xbf16>
    %cst_60 = arith.constant dense<0.000000e+00> : vector<8x64xf32>
    %199 = tpu.matmul %198, %197, %cst_60 {dimension_numbers = #tpu.dot_dimension_numbers<[1], [0], [0], [1], [0, 0, 1, 1], [], []>} : vector<8x32xbf16>, vector<32x64xbf16>, vector<8x64xf32> -> vector<8x64xf32>
    %c0_61 = arith.constant 0 : index
    %c0_62 = arith.constant 0 : index
    %200 = vector.load %arg16[%c0_61, %c0_62] : memref<1x64xf32, #tpu.memory_space<vmem>>, vector<1x64xf32>
    %201 = vector.broadcast %200 : vector<1x64xf32> to vector<8x64xf32>
    %202 = arith.addf %199, %201 : vector<8x64xf32>
    %cst_63 = arith.constant 0.000000e+00 : f32
    %203 = vector.broadcast %cst_63 : f32 to vector<8x64xf32>
    %204 = arith.maximumf %202, %203 : vector<8x64xf32>
    %c0_64 = arith.constant 0 : index
    %c0_65 = arith.constant 0 : index
    %205 = vector.load %arg17[%c0_64, %c0_65] : memref<64x32xbf16, #tpu.memory_space<vmem>>, vector<64x32xbf16>
    %206 = arith.truncf %204 : vector<8x64xf32> to vector<8x64xbf16>
    %cst_66 = arith.constant dense<0.000000e+00> : vector<8x32xf32>
    %207 = tpu.matmul %206, %205, %cst_66 {dimension_numbers = #tpu.dot_dimension_numbers<[1], [0], [0], [1], [0, 0, 1, 1], [], []>} : vector<8x64xbf16>, vector<64x32xbf16>, vector<8x32xf32> -> vector<8x32xf32>
    %c0_67 = arith.constant 0 : index
    %c0_68 = arith.constant 0 : index
    %208 = vector.load %arg18[%c0_67, %c0_68] : memref<1x32xf32, #tpu.memory_space<vmem>>, vector<1x32xf32>
    %209 = vector.broadcast %208 : vector<1x32xf32> to vector<8x32xf32>
    %210 = arith.addf %207, %209 : vector<8x32xf32>
    %211 = arith.addf %196, %210 : vector<8x32xf32>
    %c2 = arith.constant 2 : index
    %c0_69 = arith.constant 0 : index
    %212 = vector.load %arg19[%c2, %c0_69] : memref<3x32xf32, #tpu.memory_space<vmem>>, vector<1x32xf32>
    %c2_70 = arith.constant 2 : index
    %c0_71 = arith.constant 0 : index
    %213 = vector.load %arg20[%c2_70, %c0_71] : memref<3x32xf32, #tpu.memory_space<vmem>>, vector<1x32xf32>
    %cst_72 = arith.constant dense<0.000000e+00> : vector<8xf32>
    %214 = vector.multi_reduction <add>, %211, %cst_72 [1] : vector<8x32xf32> to vector<8xf32>
    %215 = vector.shape_cast %214 : vector<8xf32> to vector<8x1xf32>
    %cst_73 = arith.constant 3.200000e+01 : f32
    %216 = vector.broadcast %cst_73 : f32 to vector<8x1xf32>
    %217 = arith.divf %215, %216 : vector<8x1xf32>
    %218 = vector.broadcast %217 : vector<8x1xf32> to vector<8x32xf32>
    %219 = arith.subf %211, %218 : vector<8x32xf32>
    %220 = arith.mulf %219, %219 : vector<8x32xf32>
    %cst_74 = arith.constant dense<0.000000e+00> : vector<8xf32>
    %221 = vector.multi_reduction <add>, %220, %cst_74 [1] : vector<8x32xf32> to vector<8xf32>
    %222 = vector.shape_cast %221 : vector<8xf32> to vector<8x1xf32>
    %cst_75 = arith.constant 3.200000e+01 : f32
    %223 = vector.broadcast %cst_75 : f32 to vector<8x1xf32>
    %224 = arith.divf %222, %223 : vector<8x1xf32>
    %cst_76 = arith.constant 9.99999974E-6 : f32
    %225 = vector.broadcast %cst_76 : f32 to vector<8x1xf32>
    %226 = arith.addf %224, %225 : vector<8x1xf32>
    %227 = math.rsqrt %226 : vector<8x1xf32>
    %228 = vector.broadcast %227 : vector<8x1xf32> to vector<8x32xf32>
    %229 = arith.mulf %219, %228 : vector<8x32xf32>
    %230 = vector.broadcast %212 : vector<1x32xf32> to vector<8x32xf32>
    %231 = arith.mulf %229, %230 : vector<8x32xf32>
    %232 = vector.broadcast %213 : vector<1x32xf32> to vector<8x32xf32>
    %233 = arith.addf %231, %232 : vector<8x32xf32>
    %234 = vector.shape_cast %233 : vector<8x32xf32> to vector<1x8x32xf32>
    %c0_77 = arith.constant 0 : index
    %c0_78 = arith.constant 0 : index
    %c0_79 = arith.constant 0 : index
    %235 = vector.load %arg21[%c0_77, %c0_78, %c0_79] : memref<1x8x32xf32, #tpu.memory_space<vmem>>, vector<1x8x32xf32>
    tpu.vector_store %arg21[%c0_77, %c0_78, %c0_79], %234 {strides = array<i32>} : memref<1x8x32xf32, #tpu.memory_space<vmem>>, vector<1x8x32xf32>,
    return
  }
  func.func @transform_0(%arg0: i32) -> (i32, i32, i32) {
    %c0_i32 = arith.constant 0 : i32
    %c0_i32_0 = arith.constant 0 : i32
    %c0_i32_1 = arith.constant 0 : i32
    return %arg0, %c0_i32, %c0_i32_0 : i32, i32, i32
  }
  func.func @transform_1(%arg0: i32) -> (i32, i32, i32) {
    %c0_i32 = arith.constant 0 : i32
    %c0_i32_0 = arith.constant 0 : i32
    %c0_i32_1 = arith.constant 0 : i32
    return %arg0, %c0_i32, %c0_i32_0 : i32, i32, i32
  }
  func.func @transform_2(%arg0: i32) -> (i32, i32) {
    %c0_i32 = arith.constant 0 : i32
    %c0_i32_0 = arith.constant 0 : i32
    %c0_i32_1 = arith.constant 0 : i32
    return %c0_i32, %c0_i32_0 : i32, i32
  }
  func.func @transform_3(%arg0: i32) -> (i32, i32) {
    %c0_i32 = arith.constant 0 : i32
    %c0_i32_0 = arith.constant 0 : i32
    %c0_i32_1 = arith.constant 0 : i32
    return %c0_i32, %c0_i32_0 : i32, i32
  }
  func.func @transform_4(%arg0: i32) -> (i32, i32) {
    %c0_i32 = arith.constant 0 : i32
    %c0_i32_0 = arith.constant 0 : i32
    %c0_i32_1 = arith.constant 0 : i32
    return %c0_i32, %c0_i32_0 : i32, i32
  }
  func.func @transform_5(%arg0: i32) -> (i32, i32) {
    %c0_i32 = arith.constant 0 : i32
    %c0_i32_0 = arith.constant 0 : i32
    %c0_i32_1 = arith.constant 0 : i32
    return %c0_i32, %c0_i32_0 : i32, i32
  }
  func.func @transform_6(%arg0: i32) -> (i32, i32) {
    %c0_i32 = arith.constant 0 : i32
    %c0_i32_0 = arith.constant 0 : i32
    %c0_i32_1 = arith.constant 0 : i32
    return %c0_i32, %c0_i32_0 : i32, i32
  }
  func.func @transform_7(%arg0: i32) -> (i32, i32) {
    %c0_i32 = arith.constant 0 : i32
    %c0_i32_0 = arith.constant 0 : i32
    %c0_i32_1 = arith.constant 0 : i32
    return %c0_i32, %c0_i32_0 : i32, i32
  }
  func.func @transform_8(%arg0: i32) -> (i32, i32) {
    %c0_i32 = arith.constant 0 : i32
    %c0_i32_0 = arith.constant 0 : i32
    %c0_i32_1 = arith.constant 0 : i32
    return %c0_i32, %c0_i32_0 : i32, i32
  }
  func.func @transform_9(%arg0: i32) -> (i32, i32) {
    %c0_i32 = arith.constant 0 : i32
    %c0_i32_0 = arith.constant 0 : i32
    %c0_i32_1 = arith.constant 0 : i32
    return %c0_i32, %c0_i32_0 : i32, i32
  }
  func.func @transform_10(%arg0: i32) -> (i32, i32) {
    %c0_i32 = arith.constant 0 : i32
    %c0_i32_0 = arith.constant 0 : i32
    %c0_i32_1 = arith.constant 0 : i32
    return %c0_i32, %c0_i32_0 : i32, i32
  }
  func.func @transform_11(%arg0: i32) -> (i32, i32) {
    %c0_i32 = arith.constant 0 : i32
    %c0_i32_0 = arith.constant 0 : i32
    %c0_i32_1 = arith.constant 0 : i32
    return %c0_i32, %c0_i32_0 : i32, i32
  }
  func.func @transform_12(%arg0: i32) -> (i32, i32) {
    %c0_i32 = arith.constant 0 : i32
    %c0_i32_0 = arith.constant 0 : i32
    %c0_i32_1 = arith.constant 0 : i32
    return %c0_i32, %c0_i32_0 : i32, i32
  }
  func.func @transform_13(%arg0: i32) -> (i32, i32) {
    %c0_i32 = arith.constant 0 : i32
    %c0_i32_0 = arith.constant 0 : i32
    %c0_i32_1 = arith.constant 0 : i32
    return %c0_i32, %c0_i32_0 : i32, i32
  }
  func.func @transform_14(%arg0: i32) -> (i32, i32) {
    %c0_i32 = arith.constant 0 : i32
    %c0_i32_0 = arith.constant 0 : i32
    %c0_i32_1 = arith.constant 0 : i32
    return %c0_i32, %c0_i32_0 : i32, i32
  }
  func.func @transform_15(%arg0: i32) -> (i32, i32) {
    %c0_i32 = arith.constant 0 : i32
    %c0_i32_0 = arith.constant 0 : i32
    %c0_i32_1 = arith.constant 0 : i32
    return %c0_i32, %c0_i32_0 : i32, i32
  }
  func.func @transform_16(%arg0: i32) -> (i32, i32) {
    %c0_i32 = arith.constant 0 : i32
    %c0_i32_0 = arith.constant 0 : i32
    %c0_i32_1 = arith.constant 0 : i32
    return %c0_i32, %c0_i32_0 : i32, i32
  }
  func.func @transform_17(%arg0: i32) -> (i32, i32) {
    %c0_i32 = arith.constant 0 : i32
    %c0_i32_0 = arith.constant 0 : i32
    %c0_i32_1 = arith.constant 0 : i32
    return %c0_i32, %c0_i32_0 : i32, i32
  }
  func.func @transform_18(%arg0: i32) -> (i32, i32) {
    %c0_i32 = arith.constant 0 : i32
    %c0_i32_0 = arith.constant 0 : i32
    %c0_i32_1 = arith.constant 0 : i32
    return %c0_i32, %c0_i32_0 : i32, i32
  }
  func.func @transform_19(%arg0: i32) -> (i32, i32) {
    %c0_i32 = arith.constant 0 : i32
    %c0_i32_0 = arith.constant 0 : i32
    %c0_i32_1 = arith.constant 0 : i32
    return %c0_i32, %c0_i32_0 : i32, i32
  }
  func.func @transform_20(%arg0: i32) -> (i32, i32, i32) {
    %c0_i32 = arith.constant 0 : i32
    %c0_i32_0 = arith.constant 0 : i32
    %c0_i32_1 = arith.constant 0 : i32
    return %arg0, %c0_i32, %c0_i32_0 : i32, i32, i32
  }
}

</mosaic_0001>

<llo_original>
// kernel: tpu_custom_call.1
$region0: #{tpu_custom_call.1}
  #allocation0 [shape = 'u32[]', space=smem, size = 0x4, offset = 0x4, fixed_abs, tag = 'smem constant byte address 0x4 - core index']
  #allocation1 [shape = 'u32[144,128]{1,0:T(1,128)}', space=vmem, size = 0x12000, scoped, tag = 'internal scratch']
  %s0 = inlined_call_operand.vmem [shape: f32[2,8,32], index: 0, kind: input, shape index: {}]
  %s1 = inlined_call_operand.vmem [shape: f32[2,8,32], index: 1, kind: input, shape index: {}]
  %s2 = inlined_call_operand.hbm [shape: f32[8,8], index: 2, kind: input, shape index: {}]
  %s3 = inlined_call_operand.hbm [shape: f32[8,8], index: 3, kind: input, shape index: {}]
  %s4 = inlined_call_operand.vmem [shape: bf16[32,96], index: 4, kind: input, shape index: {}]
  %s5 = inlined_call_operand.hbm [shape: f32[1,96], index: 5, kind: input, shape index: {}]
  %s6 = inlined_call_operand.hbm [shape: bf16[32,32], index: 6, kind: input, shape index: {}]
  %s7 = inlined_call_operand.hbm [shape: f32[1,32], index: 7, kind: input, shape index: {}]
  %s8 = inlined_call_operand.hbm [shape: bf16[32,32], index: 8, kind: input, shape index: {}]
  %s9 = inlined_call_operand.hbm [shape: f32[1,32], index: 9, kind: input, shape index: {}]
  %s10 = inlined_call_operand.vmem [shape: bf16[32,64], index: 10, kind: input, shape index: {}]
  %s11 = inlined_call_operand.hbm [shape: f32[1,64], index: 11, kind: input, shape index: {}]
  %s12 = inlined_call_operand.hbm [shape: bf16[32,32], index: 12, kind: input, shape index: {}]
  %s13 = inlined_call_operand.hbm [shape: f32[1,32], index: 13, kind: input, shape index: {}]
  %s14 = inlined_call_operand.vmem [shape: bf16[32,64], index: 14, kind: input, shape index: {}]
  %s15 = inlined_call_operand.hbm [shape: f32[1,64], index: 15, kind: input, shape index: {}]
  %s16 = inlined_call_operand.vmem [shape: bf16[64,32], index: 16, kind: input, shape index: {}]
  %s17 = inlined_call_operand.vmem [shape: f32[1,32], index: 17, kind: input, shape index: {}]
  %s18 = inlined_call_operand.vmem [shape: f32[3,32], index: 18, kind: input, shape index: {}]
  %s19 = inlined_call_operand.vmem [shape: f32[3,32], index: 19, kind: input, shape index: {}]
  %s20 = inlined_call_operand.hbm [shape: f32[2,8,32], index: 20, kind: output, shape index: {}]
  %s21 = sld [smem:[#allocation0]]
  $region157: #{tpu_custom_call.1} parent=0
    _
  %s23 = ssub.s32 1, %s21
  %s24 = scalar_select 0, %s23, %s21
  $region1: #{tpu_custom_call.1} parent=0
    #allocation2 [shape = 'u8[4096]{0}', space=vmem, size = 0x1000, scoped, tag = 'input window, operand 2, single buffered']
    #allocation3 [shape = 's32[2]{0}', space=sflag, size = 0x8, scoped, tag = 'scoped memory for tpu_custom_call.1']
    #allocation4 [shape = 's32[2]{0}', space=sflag, size = 0x8, scoped, tag = 'scoped memory for tpu_custom_call.1']
    #allocation5 [shape = 'u8[4096]{0}', space=vmem, size = 0x1000, scoped, tag = 'input window, operand 3, single buffered']
    #allocation6 [shape = 's32[1]{0}', space=sflag, size = 0x4, scoped, tag = 'scoped memory for tpu_custom_call.1']
    #allocation7 [shape = 'u8[512]{0}', space=vmem, size = 0x400, scoped, tag = 'input window, operand 5, single buffered']
    #allocation8 [shape = 'u8[8192]{0}', space=vmem, size = 0x2000, scoped, tag = 'input window, operand 6, single buffered']
    #allocation9 [shape = 's32[1]{0}', space=sflag, size = 0x4, scoped, tag = 'scoped memory for tpu_custom_call.1']
    #allocation10 [shape = 'u8[512]{0}', space=vmem, size = 0x400, scoped, tag = 'input window, operand 7, single buffered']
    #allocation11 [shape = 'u8[8192]{0}', space=vmem, size = 0x2000, scoped, tag = 'input window, operand 8, single buffered']
    #allocation12 [shape = 's32[1]{0}', space=sflag, size = 0x4, scoped, tag = 'scoped memory for tpu_custom_call.1']
    #allocation13 [shape = 'u8[512]{0}', space=vmem, size = 0x400, scoped, tag = 'input window, operand 9, single buffered']
    #allocation14 [shape = 'u8[512]{0}', space=vmem, size = 0x400, scoped, tag = 'input window, operand 11, single buffered']
    #allocation15 [shape = 's32[1]{0}', space=sflag, size = 0x4, scoped, tag = 'scoped memory for tpu_custom_call.1']
    #allocation16 [shape = 'u8[8192]{0}', space=vmem, size = 0x2000, scoped, tag = 'input window, operand 12, single buffered']
    #allocation17 [shape = 'u8[512]{0}', space=vmem, size = 0x400, scoped, tag = 'input window, operand 13, single buffered']
    #allocation18 [shape = 's32[1]{0}', space=sflag, size = 0x4, scoped, tag = 'scoped memory for tpu_custom_call.1']
    #allocation19 [shape = 'u8[512]{0}', space=vmem, size = 0x400, scoped, tag = 'input window, operand 15, single buffered']
    #allocation20 [shape = 'u8[8192]{0}', space=vmem, size = 0x2000, scoped, tag = 'output window, operand 0']
    %25 = vsyncpa [#allocation3], 0
    %26 = vsyncpa [#allocation6], 0
    %27 = vsyncpa [#allocation9], 0
    %28 = vsyncpa [#allocation12], 0
    %29 = vsyncpa [#allocation15], 0
    %30 = vsyncpa [#allocation18], 0
    %31 = vsyncpa [#allocation4], 0
    %s32 = scalar_lea.sflag [#allocation4], 1
    %33 = vsyncpa %s32, 0
    loop: start=0, step=1, limit=4
    $region2: #{tpu_custom_call.1} parent=1 // loop_pre_header
      _
    $region3: #{tpu_custom_call.1} parent=1 // loop_header
      %s35 = sphi 0, %s39
      %p36 = scmp.ge.s32.totalorder %s35, 4
      %s45 = sphi 0, %s47
      %s48 = sphi 0, %s45
      %s49 = sphi 0, %s48
      %s65 = sphi 0, %s49
      %s71 = sphi 0, %s73
      %s74 = sphi 0, %s71
      %s75 = sphi 0, %s74
      %s91 = sphi 0, %s75
      %s95 = sphi 0, %s95
      %s97 = sphi 0, %s95
      %s98 = sphi 0, %s97
      %s112 = sphi 0, %s98
      %s116 = sphi 0, %s116
      %s118 = sphi 0, %s116
      %s119 = sphi 0, %s118
      %s133 = sphi 0, %s119
      %s137 = sphi 0, %s137
      %s139 = sphi 0, %s137
      %s140 = sphi 0, %s139
      %s154 = sphi 0, %s140
      %s158 = sphi 0, %s158
      %s160 = sphi 0, %s158
      %s161 = sphi 0, %s160
      %s175 = sphi 0, %s161
      %s179 = sphi 0, %s179
      %s181 = sphi 0, %s179
      %s182 = sphi 0, %s181
      %s196 = sphi 0, %s182
      %s200 = sphi 0, %s200
      %s202 = sphi 0, %s200
      %s203 = sphi 0, %s202
      %s217 = sphi 0, %s203
      %s221 = sphi 0, %s221
      %s223 = sphi 0, %s221
      %s224 = sphi 0, %s223
      %s238 = sphi 0, %s224
      %s242 = sphi 0, %s242
      %s244 = sphi 0, %s242
      %s245 = sphi 0, %s244
      %s259 = sphi 0, %s245
      %s263 = sphi 0, %s263
      %s265 = sphi 0, %s263
      %s266 = sphi 0, %s265
      %s280 = sphi 0, %s266
      %s284 = sphi 0, %s284
      %s286 = sphi 0, %s284
      %s287 = sphi 0, %s286
      %s301 = sphi 0, %s287
      %s305 = sphi 0, %s305
      %s307 = sphi 0, %s305
      %s308 = sphi 0, %s307
      %s322 = sphi 0, %s308
      %s326 = sphi 0, %s326
      %s328 = sphi 0, %s326
      %s329 = sphi 0, %s328
      %s343 = sphi 0, %s329
      %s347 = sphi 0, %s347
      %s349 = sphi 0, %s347
      %s350 = sphi 0, %s349
      %s364 = sphi 0, %s350
      %s368 = sphi 0, %s368
      %s370 = sphi 0, %s368
      %s371 = sphi 0, %s370
      %s385 = sphi 0, %s371
      %s389 = sphi 0, %s389
      %s391 = sphi 0, %s389
      %s392 = sphi 0, %s391
      %s406 = sphi 0, %s392
      %s410 = sphi 0, %s410
      %s412 = sphi 0, %s410
      %s413 = sphi 0, %s412
      %s427 = sphi 0, %s413
      %s431 = sphi 0, %s431
      %s433 = sphi 0, %s431
      %s434 = sphi 0, %s433
      %s448 = sphi 0, %s434
      %s452 = sphi 0, %s452
      %s454 = sphi 0, %s452
      %s455 = sphi 0, %s454
      %s469 = sphi 0, %s455
      %s475 = sphi 0, %s477
      %s478 = sphi 0, %s475
      %s479 = sphi 0, %s478
      %s495 = sphi 0, %s479
    $region4: #{tpu_custom_call.1} parent=1 // loop_header_branch
      %38 = sbr.rel (%p36) target = $region8
    $region5: #{tpu_custom_call.1} parent=1 // loop_body
      %s40 = ssub.s32 %s35, 1
      %s41 = ssub.s32 %s35, 2
      %s42 = sadd.s32 %s35, 1
      %s43 = ssub.s32 %s35, %s42
      %p44 = scmp.eq.s32.totalorder %s43, 0
      %s46 = sadd.s32 %s45, 1
      %s47 = scalar_select %p44, %s45, %s46
      %p50 = pneg %p44
      %p51 = scmp.eq.s32.totalorder %s35, 1
      %p52 = por %p50, %p51
      %p53 = scmp.ne.s32.totalorder %s45, %s48
      %p54 = scmp.eq.s32.totalorder %s35, 0
      %p55 = por %p53, %p54
      %p56 = scmp.ne.s32.totalorder %s45, %s48
      %p57 = scmp.eq.s32.totalorder %s40, 1
      %p58 = por %p56, %p57
      %p59 = scmp.ne.s32.totalorder %s48, %s49
      %p60 = scmp.eq.s32.totalorder %s40, 0
      %p61 = por %p59, %p60
      %p62 = scmp.ne.s32.totalorder %s48, %s49
      %p63 = scmp.eq.s32.totalorder %s41, 1
      %p64 = por %p62, %p63
      %p66 = scmp.ne.s32.totalorder %s49, %s65
      %p67 = scmp.eq.s32.totalorder %s41, 0
      %p68 = por %p66, %p67
      %s69 = ssub.s32 %s35, %s42
      %p70 = scmp.eq.s32.totalorder %s69, 0
      %s72 = sadd.s32 %s71, 1
      %s73 = scalar_select %p70, %s71, %s72
      %p76 = pneg %p70
      %p77 = scmp.eq.s32.totalorder %s35, 1
      %p78 = por %p76, %p77
      %p79 = scmp.ne.s32.totalorder %s71, %s74
      %p80 = scmp.eq.s32.totalorder %s35, 0
      %p81 = por %p79, %p80
      %p82 = scmp.ne.s32.totalorder %s71, %s74
      %p83 = scmp.eq.s32.totalorder %s40, 1
      %p84 = por %p82, %p83
      %p85 = scmp.ne.s32.totalorder %s74, %s75
      %p86 = scmp.eq.s32.totalorder %s40, 0
      %p87 = por %p85, %p86
      %p88 = scmp.ne.s32.totalorder %s74, %s75
      %p89 = scmp.eq.s32.totalorder %s41, 1
      %p90 = por %p88, %p89
      %p92 = scmp.ne.s32.totalorder %s75, %s91
      %p93 = scmp.eq.s32.totalorder %s41, 0
      %p94 = por %p92, %p93
      %s96 = sadd.s32 %s95, 1
      %p99 = scmp.eq.s32.totalorder %s35, 1
      %p100 = scmp.ne.s32.totalorder %s95, %s97
      %p101 = scmp.eq.s32.totalorder %s35, 0
      %p102 = por %p100, %p101
      %p103 = scmp.ne.s32.totalorder %s95, %s97
      %p104 = scmp.eq.s32.totalorder %s40, 1
      %p105 = por %p103, %p104
      %p106 = scmp.ne.s32.totalorder %s97, %s98
      %p107 = scmp.eq.s32.totalorder %s40, 0
      %p108 = por %p106, %p107
      %p109 = scmp.ne.s32.totalorder %s97, %s98
      %p110 = scmp.eq.s32.totalorder %s41, 1
      %p111 = por %p109, %p110
      %p113 = scmp.ne.s32.totalorder %s98, %s112
      %p114 = scmp.eq.s32.totalorder %s41, 0
      %p115 = por %p113, %p114
      %s117 = sadd.s32 %s116, 1
      %p120 = scmp.eq.s32.totalorder %s35, 1
      %p121 = scmp.ne.s32.totalorder %s116, %s118
      %p122 = scmp.eq.s32.totalorder %s35, 0
      %p123 = por %p121, %p122
      %p124 = scmp.ne.s32.totalorder %s116, %s118
      %p125 = scmp.eq.s32.totalorder %s40, 1
      %p126 = por %p124, %p125
      %p127 = scmp.ne.s32.totalorder %s118, %s119
      %p128 = scmp.eq.s32.totalorder %s40, 0
      %p129 = por %p127, %p128
      %p130 = scmp.ne.s32.totalorder %s118, %s119
      %p131 = scmp.eq.s32.totalorder %s41, 1
      %p132 = por %p130, %p131
      %p134 = scmp.ne.s32.totalorder %s119, %s133
      %p135 = scmp.eq.s32.totalorder %s41, 0
      %p136 = por %p134, %p135
      %s138 = sadd.s32 %s137, 1
      %p141 = scmp.eq.s32.totalorder %s35, 1
      %p142 = scmp.ne.s32.totalorder %s137, %s139
      %p143 = scmp.eq.s32.totalorder %s35, 0
      %p144 = por %p142, %p143
      %p145 = scmp.ne.s32.totalorder %s137, %s139
      %p146 = scmp.eq.s32.totalorder %s40, 1
      %p147 = por %p145, %p146
      %p148 = scmp.ne.s32.totalorder %s139, %s140
      %p149 = scmp.eq.s32.totalorder %s40, 0
      %p150 = por %p148, %p149
      %p151 = scmp.ne.s32.totalorder %s139, %s140
      %p152 = scmp.eq.s32.totalorder %s41, 1
      %p153 = por %p151, %p152
      %p155 = scmp.ne.s32.totalorder %s140, %s154
      %p156 = scmp.eq.s32.totalorder %s41, 0
      %p157 = por %p155, %p156
      %s159 = sadd.s32 %s158, 1
      %p162 = scmp.eq.s32.totalorder %s35, 1
      %p163 = scmp.ne.s32.totalorder %s158, %s160
      %p164 = scmp.eq.s32.totalorder %s35, 0
      %p165 = por %p163, %p164
      %p166 = scmp.ne.s32.totalorder %s158, %s160
      %p167 = scmp.eq.s32.totalorder %s40, 1
      %p168 = por %p166, %p167
      %p169 = scmp.ne.s32.totalorder %s160, %s161
      %p170 = scmp.eq.s32.totalorder %s40, 0
      %p171 = por %p169, %p170
      %p172 = scmp.ne.s32.totalorder %s160, %s161
      %p173 = scmp.eq.s32.totalorder %s41, 1
      %p174 = por %p172, %p173
      %p176 = scmp.ne.s32.totalorder %s161, %s175
      %p177 = scmp.eq.s32.totalorder %s41, 0
      %p178 = por %p176, %p177
      %s180 = sadd.s32 %s179, 1
      %p183 = scmp.eq.s32.totalorder %s35, 1
      %p184 = scmp.ne.s32.totalorder %s179, %s181
      %p185 = scmp.eq.s32.totalorder %s35, 0
      %p186 = por %p184, %p185
      %p187 = scmp.ne.s32.totalorder %s179, %s181
      %p188 = scmp.eq.s32.totalorder %s40, 1
      %p189 = por %p187, %p188
      %p190 = scmp.ne.s32.totalorder %s181, %s182
      %p191 = scmp.eq.s32.totalorder %s40, 0
      %p192 = por %p190, %p191
      %p193 = scmp.ne.s32.totalorder %s181, %s182
      %p194 = scmp.eq.s32.totalorder %s41, 1
      %p195 = por %p193, %p194
      %p197 = scmp.ne.s32.totalorder %s182, %s196
      %p198 = scmp.eq.s32.totalorder %s41, 0
      %p199 = por %p197, %p198
      %s201 = sadd.s32 %s200, 1
      %p204 = scmp.eq.s32.totalorder %s35, 1
      %p205 = scmp.ne.s32.totalorder %s200, %s202
      %p206 = scmp.eq.s32.totalorder %s35, 0
      %p207 = por %p205, %p206
      %p208 = scmp.ne.s32.totalorder %s200, %s202
      %p209 = scmp.eq.s32.totalorder %s40, 1
      %p210 = por %p208, %p209
      %p211 = scmp.ne.s32.totalorder %s202, %s203
      %p212 = scmp.eq.s32.totalorder %s40, 0
      %p213 = por %p211, %p212
      %p214 = scmp.ne.s32.totalorder %s202, %s203
      %p215 = scmp.eq.s32.totalorder %s41, 1
      %p216 = por %p214, %p215
      %p218 = scmp.ne.s32.totalorder %s203, %s217
      %p219 = scmp.eq.s32.totalorder %s41, 0
      %p220 = por %p218, %p219
      %s222 = sadd.s32 %s221, 1
      %p225 = scmp.eq.s32.totalorder %s35, 1
      %p226 = scmp.ne.s32.totalorder %s221, %s223
      %p227 = scmp.eq.s32.totalorder %s35, 0
      %p228 = por %p226, %p227
      %p229 = scmp.ne.s32.totalorder %s221, %s223
      %p230 = scmp.eq.s32.totalorder %s40, 1
      %p231 = por %p229, %p230
      %p232 = scmp.ne.s32.totalorder %s223, %s224
      %p233 = scmp.eq.s32.totalorder %s40, 0
      %p234 = por %p232, %p233
      %p235 = scmp.ne.s32.totalorder %s223, %s224
      %p236 = scmp.eq.s32.totalorder %s41, 1
      %p237 = por %p235, %p236
      %p239 = scmp.ne.s32.totalorder %s224, %s238
      %p240 = scmp.eq.s32.totalorder %s41, 0
      %p241 = por %p239, %p240
      %s243 = sadd.s32 %s242, 1
      %p246 = scmp.eq.s32.totalorder %s35, 1
      %p247 = scmp.ne.s32.totalorder %s242, %s244
      %p248 = scmp.eq.s32.totalorder %s35, 0
      %p249 = por %p247, %p248
      %p250 = scmp.ne.s32.totalorder %s242, %s244
      %p251 = scmp.eq.s32.totalorder %s40, 1
      %p252 = por %p250, %p251
      %p253 = scmp.ne.s32.totalorder %s244, %s245
      %p254 = scmp.eq.s32.totalorder %s40, 0
      %p255 = por %p253, %p254
      %p256 = scmp.ne.s32.totalorder %s244, %s245
      %p257 = scmp.eq.s32.totalorder %s41, 1
      %p258 = por %p256, %p257
      %p260 = scmp.ne.s32.totalorder %s245, %s259
      %p261 = scmp.eq.s32.totalorder %s41, 0
      %p262 = por %p260, %p261
      %s264 = sadd.s32 %s263, 1
      %p267 = scmp.eq.s32.totalorder %s35, 1
      %p268 = scmp.ne.s32.totalorder %s263, %s265
      %p269 = scmp.eq.s32.totalorder %s35, 0
      %p270 = por %p268, %p269
      %p271 = scmp.ne.s32.totalorder %s263, %s265
      %p272 = scmp.eq.s32.totalorder %s40, 1
      %p273 = por %p271, %p272
      %p274 = scmp.ne.s32.totalorder %s265, %s266
      %p275 = scmp.eq.s32.totalorder %s40, 0
      %p276 = por %p274, %p275
      %p277 = scmp.ne.s32.totalorder %s265, %s266
      %p278 = scmp.eq.s32.totalorder %s41, 1
      %p279 = por %p277, %p278
      %p281 = scmp.ne.s32.totalorder %s266, %s280
      %p282 = scmp.eq.s32.totalorder %s41, 0
      %p283 = por %p281, %p282
      %s285 = sadd.s32 %s284, 1
      %p288 = scmp.eq.s32.totalorder %s35, 1
      %p289 = scmp.ne.s32.totalorder %s284, %s286
      %p290 = scmp.eq.s32.totalorder %s35, 0
      %p291 = por %p289, %p290
      %p292 = scmp.ne.s32.totalorder %s284, %s286
      %p293 = scmp.eq.s32.totalorder %s40, 1
      %p294 = por %p292, %p293
      %p295 = scmp.ne.s32.totalorder %s286, %s287
      %p296 = scmp.eq.s32.totalorder %s40, 0
      %p297 = por %p295, %p296
      %p298 = scmp.ne.s32.totalorder %s286, %s287
      %p299 = scmp.eq.s32.totalorder %s41, 1
      %p300 = por %p298, %p299
      %p302 = scmp.ne.s32.totalorder %s287, %s301
      %p303 = scmp.eq.s32.totalorder %s41, 0
      %p304 = por %p302, %p303
      %s306 = sadd.s32 %s305, 1
      %p309 = scmp.eq.s32.totalorder %s35, 1
      %p310 = scmp.ne.s32.totalorder %s305, %s307
      %p311 = scmp.eq.s32.totalorder %s35, 0
      %p312 = por %p310, %p311
      %p313 = scmp.ne.s32.totalorder %s305, %s307
      %p314 = scmp.eq.s32.totalorder %s40, 1
      %p315 = por %p313, %p314
      %p316 = scmp.ne.s32.totalorder %s307, %s308
      %p317 = scmp.eq.s32.totalorder %s40, 0
      %p318 = por %p316, %p317
      %p319 = scmp.ne.s32.totalorder %s307, %s308
      %p320 = scmp.eq.s32.totalorder %s41, 1
      %p321 = por %p319, %p320
      %p323 = scmp.ne.s32.totalorder %s308, %s322
      %p324 = scmp.eq.s32.totalorder %s41, 0
      %p325 = por %p323, %p324
      %s327 = sadd.s32 %s326, 1
      %p330 = scmp.eq.s32.totalorder %s35, 1
      %p331 = scmp.ne.s32.totalorder %s326, %s328
      %p332 = scmp.eq.s32.totalorder %s35, 0
      %p333 = por %p331, %p332
      %p334 = scmp.ne.s32.totalorder %s326, %s328
      %p335 = scmp.eq.s32.totalorder %s40, 1
      %p336 = por %p334, %p335
      %p337 = scmp.ne.s32.totalorder %s328, %s329
      %p338 = scmp.eq.s32.totalorder %s40, 0
      %p339 = por %p337, %p338
      %p340 = scmp.ne.s32.totalorder %s328, %s329
      %p341 = scmp.eq.s32.totalorder %s41, 1
      %p342 = por %p340, %p341
      %p344 = scmp.ne.s32.totalorder %s329, %s343
      %p345 = scmp.eq.s32.totalorder %s41, 0
      %p346 = por %p344, %p345
      %s348 = sadd.s32 %s347, 1
      %p351 = scmp.eq.s32.totalorder %s35, 1
      %p352 = scmp.ne.s32.totalorder %s347, %s349
      %p353 = scmp.eq.s32.totalorder %s35, 0
      %p354 = por %p352, %p353
      %p355 = scmp.ne.s32.totalorder %s347, %s349
      %p356 = scmp.eq.s32.totalorder %s40, 1
      %p357 = por %p355, %p356
      %p358 = scmp.ne.s32.totalorder %s349, %s350
      %p359 = scmp.eq.s32.totalorder %s40, 0
      %p360 = por %p358, %p359
      %p361 = scmp.ne.s32.totalorder %s349, %s350
      %p362 = scmp.eq.s32.totalorder %s41, 1
      %p363 = por %p361, %p362
      %p365 = scmp.ne.s32.totalorder %s350, %s364
      %p366 = scmp.eq.s32.totalorder %s41, 0
      %p367 = por %p365, %p366
      %s369 = sadd.s32 %s368, 1
      %p372 = scmp.eq.s32.totalorder %s35, 1
      %p373 = scmp.ne.s32.totalorder %s368, %s370
      %p374 = scmp.eq.s32.totalorder %s35, 0
      %p375 = por %p373, %p374
      %p376 = scmp.ne.s32.totalorder %s368, %s370
      %p377 = scmp.eq.s32.totalorder %s40, 1
      %p378 = por %p376, %p377
      %p379 = scmp.ne.s32.totalorder %s370, %s371
      %p380 = scmp.eq.s32.totalorder %s40, 0
      %p381 = por %p379, %p380
      %p382 = scmp.ne.s32.totalorder %s370, %s371
      %p383 = scmp.eq.s32.totalorder %s41, 1
      %p384 = por %p382, %p383
      %p386 = scmp.ne.s32.totalorder %s371, %s385
      %p387 = scmp.eq.s32.totalorder %s41, 0
      %p388 = por %p386, %p387
      %s390 = sadd.s32 %s389, 1
      %p393 = scmp.eq.s32.totalorder %s35, 1
      %p394 = scmp.ne.s32.totalorder %s389, %s391
      %p395 = scmp.eq.s32.totalorder %s35, 0
      %p396 = por %p394, %p395
      %p397 = scmp.ne.s32.totalorder %s389, %s391
      %p398 = scmp.eq.s32.totalorder %s40, 1
      %p399 = por %p397, %p398
      %p400 = scmp.ne.s32.totalorder %s391, %s392
      %p401 = scmp.eq.s32.totalorder %s40, 0
      %p402 = por %p400, %p401
      %p403 = scmp.ne.s32.totalorder %s391, %s392
      %p404 = scmp.eq.s32.totalorder %s41, 1
      %p405 = por %p403, %p404
      %p407 = scmp.ne.s32.totalorder %s392, %s406
      %p408 = scmp.eq.s32.totalorder %s41, 0
      %p409 = por %p407, %p408
      %s411 = sadd.s32 %s410, 1
      %p414 = scmp.eq.s32.totalorder %s35, 1
      %p415 = scmp.ne.s32.totalorder %s410, %s412
      %p416 = scmp.eq.s32.totalorder %s35, 0
      %p417 = por %p415, %p416
      %p418 = scmp.ne.s32.totalorder %s410, %s412
      %p419 = scmp.eq.s32.totalorder %s40, 1
      %p420 = por %p418, %p419
      %p421 = scmp.ne.s32.totalorder %s412, %s413
      %p422 = scmp.eq.s32.totalorder %s40, 0
      %p423 = por %p421, %p422
      %p424 = scmp.ne.s32.totalorder %s412, %s413
      %p425 = scmp.eq.s32.totalorder %s41, 1
      %p426 = por %p424, %p425
      %p428 = scmp.ne.s32.totalorder %s413, %s427
      %p429 = scmp.eq.s32.totalorder %s41, 0
      %p430 = por %p428, %p429
      %s432 = sadd.s32 %s431, 1
      %p435 = scmp.eq.s32.totalorder %s35, 1
      %p436 = scmp.ne.s32.totalorder %s431, %s433
      %p437 = scmp.eq.s32.totalorder %s35, 0
      %p438 = por %p436, %p437
      %p439 = scmp.ne.s32.totalorder %s431, %s433
      %p440 = scmp.eq.s32.totalorder %s40, 1
      %p441 = por %p439, %p440
      %p442 = scmp.ne.s32.totalorder %s433, %s434
      %p443 = scmp.eq.s32.totalorder %s40, 0
      %p444 = por %p442, %p443
      %p445 = scmp.ne.s32.totalorder %s433, %s434
      %p446 = scmp.eq.s32.totalorder %s41, 1
      %p447 = por %p445, %p446
      %p449 = scmp.ne.s32.totalorder %s434, %s448
      %p450 = scmp.eq.s32.totalorder %s41, 0
      %p451 = por %p449, %p450
      %s453 = sadd.s32 %s452, 1
      %p456 = scmp.eq.s32.totalorder %s35, 1
      %p457 = scmp.ne.s32.totalorder %s452, %s454
      %p458 = scmp.eq.s32.totalorder %s35, 0
      %p459 = por %p457, %p458
      %p460 = scmp.ne.s32.totalorder %s452, %s454
      %p461 = scmp.eq.s32.totalorder %s40, 1
      %p462 = por %p460, %p461
      %p463 = scmp.ne.s32.totalorder %s454, %s455
      %p464 = scmp.eq.s32.totalorder %s40, 0
      %p465 = por %p463, %p464
      %p466 = scmp.ne.s32.totalorder %s454, %s455
      %p467 = scmp.eq.s32.totalorder %s41, 1
      %p468 = por %p466, %p467
      %p470 = scmp.ne.s32.totalorder %s455, %s469
      %p471 = scmp.eq.s32.totalorder %s41, 0
      %p472 = por %p470, %p471
      %s473 = ssub.s32 %s35, %s42
      %p474 = scmp.eq.s32.totalorder %s473, 0
      %s476 = sadd.s32 %s475, 1
      %s477 = scalar_select %p474, %s475, %s476
      %p480 = pneg %p474
      %p481 = scmp.eq.s32.totalorder %s35, 1
      %p482 = por %p480, %p481
      %p483 = scmp.ne.s32.totalorder %s475, %s478
      %p484 = scmp.eq.s32.totalorder %s35, 0
      %p485 = por %p483, %p484
      %p486 = scmp.ne.s32.totalorder %s475, %s478
      %p487 = scmp.eq.s32.totalorder %s40, 1
      %p488 = por %p486, %p487
      %p489 = scmp.ne.s32.totalorder %s478, %s479
      %p490 = scmp.eq.s32.totalorder %s40, 0
      %p491 = por %p489, %p490
      %p492 = scmp.ne.s32.totalorder %s478, %s479
      %p493 = scmp.eq.s32.totalorder %s41, 1
      %p494 = por %p492, %p493
      %p496 = scmp.ne.s32.totalorder %s479, %s495
      %p497 = scmp.eq.s32.totalorder %s41, 0
      %p498 = por %p496, %p497
      %p499 = scmp.le.s32.totalorder 1, %s35
      %p500 = scmp.lt.s32.totalorder %s35, 3
      %p501 = pnand %p499, %p500
      %p502 = pneg %p501
      // Predicated region
      $region9: #{tpu_custom_call.1} parent=5 // pred_check
        _
      $region10: #{tpu_custom_call.1} parent=5 // pred_check_branch
        %504 = sbr.rel (%p501) target = $region12
      $region11: #{tpu_custom_call.1} parent=5 // pred_region
        %s505 = ssub.s32 %s35, 1
        // Predicated region
        $region13: #{tpu_custom_call.1} parent=11 // pred_check
          %p506 = pneg %p108
        $region14: #{tpu_custom_call.1} parent=11 // pred_check_branch
          %508 = sbr.rel (%p506) target = $region16
        $region15: #{tpu_custom_call.1} parent=11 // pred_region
          %s510 = ssub.s32 128, 128
          %511 = vsyncadd [#allocation3], %s510
          %s513 = sshll.u32 [#allocation2], 4
          %s514 = int_to_ptr.vmem [resolvable:$true] %s513
          %516 = dma.hbm_to_vmem [thread:$0]  %s2, 128, %s514, [#allocation3]
        $region16: #{tpu_custom_call.1} parent=11 // pred_fallthru
          _
        // Predicated region
        $region17: #{tpu_custom_call.1} parent=11 // pred_check
          %p517 = pneg %p129
        $region18: #{tpu_custom_call.1} parent=11 // pred_check_branch
          %519 = sbr.rel (%p517) target = $region20
        $region19: #{tpu_custom_call.1} parent=11 // pred_region
          %s521 = ssub.s32 128, 128
          %522 = vsyncadd [#allocation6], %s521
          %s524 = sshll.u32 [#allocation5], 4
          %s525 = int_to_ptr.vmem [resolvable:$true] %s524
          %527 = dma.hbm_to_vmem [thread:$0]  %s3, 128, %s525, [#allocation6]
        $region20: #{tpu_custom_call.1} parent=11 // pred_fallthru
          _
        // Predicated region
        $region21: #{tpu_custom_call.1} parent=11 // pred_check
          %p528 = pneg %p150
        $region22: #{tpu_custom_call.1} parent=11 // pred_check_branch
          %530 = sbr.rel (%p528) target = $region24
        $region23: #{tpu_custom_call.1} parent=11 // pred_region
          _
        $region24: #{tpu_custom_call.1} parent=11 // pred_fallthru
          _
        // Predicated region
        $region25: #{tpu_custom_call.1} parent=11 // pred_check
          %p531 = pneg %p171
        $region26: #{tpu_custom_call.1} parent=11 // pred_check_branch
          %533 = sbr.rel (%p531) target = $region28
        $region27: #{tpu_custom_call.1} parent=11 // pred_region
          %s535 = ssub.s32 16, 16
          %536 = vsyncadd [#allocation6], %s535
          %s538 = sshll.u32 [#allocation7], 4
          %s539 = int_to_ptr.vmem [resolvable:$true] %s538
          %541 = dma.hbm_to_vmem [thread:$0]  %s5, 16, %s539, [#allocation6]
        $region28: #{tpu_custom_call.1} parent=11 // pred_fallthru
          _
        // Predicated region
        $region29: #{tpu_custom_call.1} parent=11 // pred_check
          %p542 = pneg %p192
        $region30: #{tpu_custom_call.1} parent=11 // pred_check_branch
          %544 = sbr.rel (%p542) target = $region32
        $region31: #{tpu_custom_call.1} parent=11 // pred_region
          %s546 = ssub.s32 256, 256
          %547 = vsyncadd [#allocation9], %s546
          %s548 = sshll.u32 [#allocation8], 4
          %s549 = int_to_ptr.vmem [resolvable:$true] %s548
          %554 = dma.hbm_to_vmem [thread:$0]  %s6, 256, %s549, [#allocation9], 64, 64, 4
        $region32: #{tpu_custom_call.1} parent=11 // pred_fallthru
          _
        // Predicated region
        $region33: #{tpu_custom_call.1} parent=11 // pred_check
          %p555 = pneg %p213
        $region34: #{tpu_custom_call.1} parent=11 // pred_check_branch
          %557 = sbr.rel (%p555) target = $region36
        $region35: #{tpu_custom_call.1} parent=11 // pred_region
          %s559 = ssub.s32 16, 16
          %560 = vsyncadd [#allocation9], %s559
          %s562 = sshll.u32 [#allocation10], 4
          %s563 = int_to_ptr.vmem [resolvable:$true] %s562
          %565 = dma.hbm_to_vmem [thread:$0]  %s7, 16, %s563, [#allocation9]
        $region36: #{tpu_custom_call.1} parent=11 // pred_fallthru
          _
        // Predicated region
        $region37: #{tpu_custom_call.1} parent=11 // pred_check
          %p566 = pneg %p234
        $region38: #{tpu_custom_call.1} parent=11 // pred_check_branch
          %568 = sbr.rel (%p566) target = $region40
        $region39: #{tpu_custom_call.1} parent=11 // pred_region
          %s570 = ssub.s32 256, 256
          %571 = vsyncadd [#allocation12], %s570
          %s572 = sshll.u32 [#allocation11], 4
          %s573 = int_to_ptr.vmem [resolvable:$true] %s572
          %578 = dma.hbm_to_vmem [thread:$0]  %s8, 256, %s573, [#allocation12], 64, 64, 4
        $region40: #{tpu_custom_call.1} parent=11 // pred_fallthru
          _
        // Predicated region
        $region41: #{tpu_custom_call.1} parent=11 // pred_check
          %p579 = pneg %p255
        $region42: #{tpu_custom_call.1} parent=11 // pred_check_branch
          %581 = sbr.rel (%p579) target = $region44
        $region43: #{tpu_custom_call.1} parent=11 // pred_region
          %s583 = ssub.s32 16, 16
          %584 = vsyncadd [#allocation12], %s583
          %s586 = sshll.u32 [#allocation13], 4
          %s587 = int_to_ptr.vmem [resolvable:$true] %s586
          %589 = dma.hbm_to_vmem [thread:$0]  %s9, 16, %s587, [#allocation12]
        $region44: #{tpu_custom_call.1} parent=11 // pred_fallthru
          _
        // Predicated region
        $region45: #{tpu_custom_call.1} parent=11 // pred_check
          %p590 = pneg %p276
        $region46: #{tpu_custom_call.1} parent=11 // pred_check_branch
          %592 = sbr.rel (%p590) target = $region48
        $region47: #{tpu_custom_call.1} parent=11 // pred_region
          _
        $region48: #{tpu_custom_call.1} parent=11 // pred_fallthru
          _
        // Predicated region
        $region49: #{tpu_custom_call.1} parent=11 // pred_check
          %p593 = pneg %p297
        $region50: #{tpu_custom_call.1} parent=11 // pred_check_branch
          %595 = sbr.rel (%p593) target = $region52
        $region51: #{tpu_custom_call.1} parent=11 // pred_region
          %s597 = ssub.s32 16, 16
          %598 = vsyncadd [#allocation15], %s597
          %s600 = sshll.u32 [#allocation14], 4
          %s601 = int_to_ptr.vmem [resolvable:$true] %s600
          %603 = dma.hbm_to_vmem [thread:$0]  %s11, 16, %s601, [#allocation15]
        $region52: #{tpu_custom_call.1} parent=11 // pred_fallthru
          _
        // Predicated region
        $region53: #{tpu_custom_call.1} parent=11 // pred_check
          %p604 = pneg %p318
        $region54: #{tpu_custom_call.1} parent=11 // pred_check_branch
          %606 = sbr.rel (%p604) target = $region56
        $region55: #{tpu_custom_call.1} parent=11 // pred_region
          %s608 = ssub.s32 256, 256
          %609 = vsyncadd [#allocation15], %s608
          %s610 = sshll.u32 [#allocation16], 4
          %s611 = int_to_ptr.vmem [resolvable:$true] %s610
          %616 = dma.hbm_to_vmem [thread:$0]  %s12, 256, %s611, [#allocation15], 64, 64, 4
        $region56: #{tpu_custom_call.1} parent=11 // pred_fallthru
          _
        // Predicated region
        $region57: #{tpu_custom_call.1} parent=11 // pred_check
          %p617 = pneg %p339
        $region58: #{tpu_custom_call.1} parent=11 // pred_check_branch
          %619 = sbr.rel (%p617) target = $region60
        $region59: #{tpu_custom_call.1} parent=11 // pred_region
          %s621 = ssub.s32 16, 16
          %622 = vsyncadd [#allocation18], %s621
          %s624 = sshll.u32 [#allocation17], 4
          %s625 = int_to_ptr.vmem [resolvable:$true] %s624
          %627 = dma.hbm_to_vmem [thread:$0]  %s13, 16, %s625, [#allocation18]
        $region60: #{tpu_custom_call.1} parent=11 // pred_fallthru
          _
        // Predicated region
        $region61: #{tpu_custom_call.1} parent=11 // pred_check
          %p628 = pneg %p360
        $region62: #{tpu_custom_call.1} parent=11 // pred_check_branch
          %630 = sbr.rel (%p628) target = $region64
        $region63: #{tpu_custom_call.1} parent=11 // pred_region
          _
        $region64: #{tpu_custom_call.1} parent=11 // pred_fallthru
          _
        // Predicated region
        $region65: #{tpu_custom_call.1} parent=11 // pred_check
          %p631 = pneg %p381
        $region66: #{tpu_custom_call.1} parent=11 // pred_check_branch
          %633 = sbr.rel (%p631) target = $region68
        $region67: #{tpu_custom_call.1} parent=11 // pred_region
          %s635 = ssub.s32 16, 16
          %636 = vsyncadd [#allocation18], %s635
          %s638 = sshll.u32 [#allocation19], 4
          %s639 = int_to_ptr.vmem [resolvable:$true] %s638
          %641 = dma.hbm_to_vmem [thread:$0]  %s15, 16, %s639, [#allocation18]
        $region68: #{tpu_custom_call.1} parent=11 // pred_fallthru
          _
        // Predicated region
        $region69: #{tpu_custom_call.1} parent=11 // pred_check
          %p642 = pneg %p402
        $region70: #{tpu_custom_call.1} parent=11 // pred_check_branch
          %644 = sbr.rel (%p642) target = $region72
        $region71: #{tpu_custom_call.1} parent=11 // pred_region
          _
        $region72: #{tpu_custom_call.1} parent=11 // pred_fallthru
          _
        // Predicated region
        $region73: #{tpu_custom_call.1} parent=11 // pred_check
          %p645 = pneg %p423
        $region74: #{tpu_custom_call.1} parent=11 // pred_check_branch
          %647 = sbr.rel (%p645) target = $region76
        $region75: #{tpu_custom_call.1} parent=11 // pred_region
          _
        $region76: #{tpu_custom_call.1} parent=11 // pred_fallthru
          _
        // Predicated region
        $region77: #{tpu_custom_call.1} parent=11 // pred_check
          %p648 = pneg %p444
        $region78: #{tpu_custom_call.1} parent=11 // pred_check_branch
          %650 = sbr.rel (%p648) target = $region80
        $region79: #{tpu_custom_call.1} parent=11 // pred_region
          _
        $region80: #{tpu_custom_call.1} parent=11 // pred_fallthru
          _
        // Predicated region
        $region81: #{tpu_custom_call.1} parent=11 // pred_check
          %p651 = pneg %p465
        $region82: #{tpu_custom_call.1} parent=11 // pred_check_branch
          %653 = sbr.rel (%p651) target = $region84
        $region83: #{tpu_custom_call.1} parent=11 // pred_region
          _
        $region84: #{tpu_custom_call.1} parent=11 // pred_fallthru
          _
      $region12: #{tpu_custom_call.1} parent=5 // pred_fallthru
        _
      %p654 = scmp.lt.s32.totalorder %s35, 2
      // Predicated region
      $region85: #{tpu_custom_call.1} parent=5 // pred_check
        %p655 = pneg %p654
      $region86: #{tpu_custom_call.1} parent=5 // pred_check_branch
        %657 = sbr.rel (%p655) target = $region88
      $region87: #{tpu_custom_call.1} parent=5 // pred_region
        // Predicated region
        $region89: #{tpu_custom_call.1} parent=87 // pred_check
          %p658 = pneg %p55
        $region90: #{tpu_custom_call.1} parent=87 // pred_check_branch
          %660 = sbr.rel (%p658) target = $region92
        $region91: #{tpu_custom_call.1} parent=87 // pred_region
          %p661 = scmp.lt.s32.totalorder %s35, 1
          %s662 = scalar_select %p661, %s35, 1
          %s663 = smul.addr %s662, 8
          %s664 = scalar_lea.vmem %s0, %s663
        $region92: #{tpu_custom_call.1} parent=87 // pred_fallthru
          _
        // Predicated region
        $region93: #{tpu_custom_call.1} parent=87 // pred_check
          %p665 = pneg %p81
        $region94: #{tpu_custom_call.1} parent=87 // pred_check_branch
          %667 = sbr.rel (%p665) target = $region96
        $region95: #{tpu_custom_call.1} parent=87 // pred_region
          %p668 = scmp.lt.s32.totalorder %s35, 1
          %s669 = scalar_select %p668, %s35, 1
          %s670 = smul.addr %s669, 8
          %s671 = scalar_lea.vmem %s1, %s670
        $region96: #{tpu_custom_call.1} parent=87 // pred_fallthru
          _
      $region88: #{tpu_custom_call.1} parent=5 // pred_fallthru
        _
      %p672 = scmp.le.s32.totalorder 1, %s35
      %p673 = scmp.lt.s32.totalorder %s35, 3
      %p674 = pnand %p672, %p673
      %p675 = pneg %p674
      // Predicated region
      $region97: #{tpu_custom_call.1} parent=5 // pred_check
        _
      $region98: #{tpu_custom_call.1} parent=5 // pred_check_branch
        %677 = sbr.rel (%p674) target = $region100
      $region99: #{tpu_custom_call.1} parent=5 // pred_region
        %s678 = ssub.s32 %s35, 1
        // Predicated region
        $region101: #{tpu_custom_call.1} parent=99 // pred_check
          %p679 = pneg %p108
        $region102: #{tpu_custom_call.1} parent=99 // pred_check_branch
          %681 = sbr.rel (%p679) target = $region104
        $region103: #{tpu_custom_call.1} parent=99 // pred_region
          %682 = dma.done [#allocation3], 128
        $region104: #{tpu_custom_call.1} parent=99 // pred_fallthru
          _
        // Predicated region
        $region105: #{tpu_custom_call.1} parent=99 // pred_check
          %p683 = pneg %p129
        $region106: #{tpu_custom_call.1} parent=99 // pred_check_branch
          %685 = sbr.rel (%p683) target = $region108
        $region107: #{tpu_custom_call.1} parent=99 // pred_region
          %686 = dma.done [#allocation6], 128
        $region108: #{tpu_custom_call.1} parent=99 // pred_fallthru
          _
        // Predicated region
        $region109: #{tpu_custom_call.1} parent=99 // pred_check
          %p687 = pneg %p171
        $region110: #{tpu_custom_call.1} parent=99 // pred_check_branch
          %689 = sbr.rel (%p687) target = $region112
        $region111: #{tpu_custom_call.1} parent=99 // pred_region
          %690 = dma.done [#allocation6], 16
        $region112: #{tpu_custom_call.1} parent=99 // pred_fallthru
          _
        // Predicated region
        $region113: #{tpu_custom_call.1} parent=99 // pred_check
          %p691 = pneg %p192
        $region114: #{tpu_custom_call.1} parent=99 // pred_check_branch
          %693 = sbr.rel (%p691) target = $region116
        $region115: #{tpu_custom_call.1} parent=99 // pred_region
          %694 = dma.done [#allocation9], 256
        $region116: #{tpu_custom_call.1} parent=99 // pred_fallthru
          _
        // Predicated region
        $region117: #{tpu_custom_call.1} parent=99 // pred_check
          %p695 = pneg %p213
        $region118: #{tpu_custom_call.1} parent=99 // pred_check_branch
          %697 = sbr.rel (%p695) target = $region120
        $region119: #{tpu_custom_call.1} parent=99 // pred_region
          %698 = dma.done [#allocation9], 16
        $region120: #{tpu_custom_call.1} parent=99 // pred_fallthru
          _
        // Predicated region
        $region121: #{tpu_custom_call.1} parent=99 // pred_check
          %p699 = pneg %p234
        $region122: #{tpu_custom_call.1} parent=99 // pred_check_branch
          %701 = sbr.rel (%p699) target = $region124
        $region123: #{tpu_custom_call.1} parent=99 // pred_region
          %702 = dma.done [#allocation12], 256
        $region124: #{tpu_custom_call.1} parent=99 // pred_fallthru
          _
        // Predicated region
        $region125: #{tpu_custom_call.1} parent=99 // pred_check
          %p703 = pneg %p255
        $region126: #{tpu_custom_call.1} parent=99 // pred_check_branch
          %705 = sbr.rel (%p703) target = $region128
        $region127: #{tpu_custom_call.1} parent=99 // pred_region
          %706 = dma.done [#allocation12], 16
        $region128: #{tpu_custom_call.1} parent=99 // pred_fallthru
          _
        // Predicated region
        $region129: #{tpu_custom_call.1} parent=99 // pred_check
          %p707 = pneg %p297
        $region130: #{tpu_custom_call.1} parent=99 // pred_check_branch
          %709 = sbr.rel (%p707) target = $region132
        $region131: #{tpu_custom_call.1} parent=99 // pred_region
          %710 = dma.done [#allocation15], 16
        $region132: #{tpu_custom_call.1} parent=99 // pred_fallthru
          _
        // Predicated region
        $region133: #{tpu_custom_call.1} parent=99 // pred_check
          %p711 = pneg %p318
        $region134: #{tpu_custom_call.1} parent=99 // pred_check_branch
          %713 = sbr.rel (%p711) target = $region136
        $region135: #{tpu_custom_call.1} parent=99 // pred_region
          %714 = dma.done [#allocation15], 256
        $region136: #{tpu_custom_call.1} parent=99 // pred_fallthru
          _
        // Predicated region
        $region137: #{tpu_custom_call.1} parent=99 // pred_check
          %p715 = pneg %p339
        $region138: #{tpu_custom_call.1} parent=99 // pred_check_branch
          %717 = sbr.rel (%p715) target = $region140
        $region139: #{tpu_custom_call.1} parent=99 // pred_region
          %718 = dma.done [#allocation18], 16
        $region140: #{tpu_custom_call.1} parent=99 // pred_fallthru
          _
        // Predicated region
        $region141: #{tpu_custom_call.1} parent=99 // pred_check
          %p719 = pneg %p381
        $region142: #{tpu_custom_call.1} parent=99 // pred_check_branch
          %721 = sbr.rel (%p719) target = $region144
        $region143: #{tpu_custom_call.1} parent=99 // pred_region
          %722 = dma.done [#allocation18], 16
        $region144: #{tpu_custom_call.1} parent=99 // pred_fallthru
          _
        %p723 = scmp.lt.s32.totalorder %s40, 1
        %s724 = scalar_select %p723, %s40, 1
        %s725 = smul.addr %s724, 8
        %s726 = scalar_lea.vmem %s0, %s725
        %p727 = pneg %p61
        %p728 = pneg %p58
        %p729 = scmp.lt.s32.totalorder %s40, 1
        %s730 = scalar_select %p729, %s40, 1
        %s731 = smul.addr %s730, 8
        %s732 = scalar_lea.vmem %s1, %s731
        %p733 = pneg %p87
        %p734 = pneg %p84
        %p735 = pneg %p108
        %p736 = pneg %p105
        %p737 = pneg %p129
        %p738 = pneg %p126
        %p739 = pneg %p150
        %p740 = pneg %p147
        %p741 = pneg %p171
        %p742 = pneg %p168
        %p743 = pneg %p192
        %p744 = pneg %p189
        %p745 = pneg %p213
        %p746 = pneg %p210
        %p747 = pneg %p234
        %p748 = pneg %p231
        %p749 = pneg %p255
        %p750 = pneg %p252
        %p751 = pneg %p276
        %p752 = pneg %p273
        %p753 = pneg %p297
        %p754 = pneg %p294
        %p755 = pneg %p318
        %p756 = pneg %p315
        %p757 = pneg %p339
        %p758 = pneg %p336
        %p759 = pneg %p360
        %p760 = pneg %p357
        %p761 = pneg %p381
        %p762 = pneg %p378
        %p763 = pneg %p402
        %p764 = pneg %p399
        %p765 = pneg %p423
        %p766 = pneg %p420
        %p767 = pneg %p444
        %p768 = pneg %p441
        %p769 = pneg %p465
        %p770 = pneg %p462
        %p771 = pneg %p491
        %p772 = pneg %p488
        %s773 = sand.u32 %s478, 1
        %s774 = scalar_lea.sflag [#allocation4], %s773
        %s775 = sand.u32 %s478, 1
        %s776 = smul.addr %s775, 8
        %s777 = scalar_lea.vmem [#allocation20], %s776
        %p778 = scmp.lt.s32.totalorder %s40, 1
        %s779 = scalar_select %p778, %s40, 1
        %s780 = smul.addr %s779, 8
        %s781 = scalar_lea.vmem %s0, %s780
        %p782 = scmp.lt.s32.totalorder %s40, 1
        %s783 = scalar_select %p782, %s40, 1
        %s784 = smul.addr %s783, 8
        %s785 = scalar_lea.vmem %s1, %s784
        %v787 = vld [vmem:[%s781] sm:$0xff]
        %v788 = vld [vmem:[%s785] sm:$0xff]
        %v789 = vld [vmem:[#allocation2] sm:$0xff]
        %v790 = vld [vmem:[#allocation5] sm:$0xff]
        %v791 = vld [vmem:[%s4] sm:$0xf]
        %v792 = vld [vmem:[%s4 + $0x4] sm:$0xf]
        %v793 = vld [vmem:[%s4 + $0x8] sm:$0xf]
        %v794 = vld [vmem:[%s4 + $0xc] sm:$0xf]
        %v795 = vpack.c.bf16 %v787, %v787
        %v796 = vld [vmem:[#allocation7] sm:$0x1]
        %v798 = vlaneseq
        %v799 = vshrl.u32 %v798, 7
        %v800 = vsub.s32 0, %v799
        %v801 = vrot.slane %v796, %v800
        %v807 = vunpack.c.l.b16 %v791
        %v808 = vunpack.c.l.b16 %v792
        %v809 = vunpack.c.l.b16 %v793
        %v810 = vunpack.c.l.b16 %v794
        %v811 = vpack.c.b16 %v808, %v807
        %v812 = vpack.c.b16 %v810, %v809
        %vm815 = vcmask 261120
        %v817 = vsel %vm815, %v795, 0
        %819 = vmatprep.subr.bf16.mxu0 0
        %820 = vmatpush1.bf16.msra.mxu0 %v811
        %821 = vmatprep.subr.bf16.mxu0 0
        %822 = vmatpush1.bf16.msra.mxu0 %v812
        %823 = vmatprep.subr.bf16.mxu0 0
        %824 = vmatpush1.bf16.msra.mxu0 0
        %825 = vmatprep.subr.bf16.mxu0 0
        %826 = vmatpush1.bf16.msra.mxu0 0
        %827 = vmatprep.subr.bf16.mxu0 0
        %828 = vmatpush1.bf16.msra.mxu0 0
        %829 = vmatprep.subr.bf16.mxu0 0
        %830 = vmatpush1.bf16.msra.mxu0 0
        %831 = vmatprep.subr.bf16.mxu0 0
        %832 = vmatpush1.bf16.msra.mxu0 0
        %833 = vmatprep.subr.bf16.mxu0 0
        %834 = vmatpush1.bf16.msra.mxu0 0
        %835 = vmatprep.subr.bf16.mxu0 0
        %836 = vmatpush1.bf16.msra.mxu0 0
        %837 = vmatprep.subr.bf16.mxu0 0
        %838 = vmatpush1.bf16.msra.mxu0 0
        %839 = vmatprep.subr.bf16.mxu0 0
        %840 = vmatpush1.bf16.msra.mxu0 0
        %841 = vmatprep.subr.bf16.mxu0 0
        %842 = vmatpush1.bf16.msra.mxu0 0
        %843 = vmatprep.subr.bf16.mxu0 0
        %844 = vmatpush1.bf16.msra.mxu0 0
        %845 = vmatprep.subr.bf16.mxu0 0
        %846 = vmatpush1.bf16.msra.mxu0 0
        %847 = vmatprep.subr.bf16.mxu0 0
        %848 = vmatpush1.bf16.msra.mxu0 0
        %849 = vmatprep.subr.bf16.mxu0 0
        %850 = vmatpush1.bf16.msra.mxu0 0
        %851 = vmatprep.mubr.bf16.mxu0 0
        %852 = vmatmul.mubr.bf16.gmra.mrb[0].mxu0 %v817
        %v853 = vpop.f32.mrb[0].mxu0
        %v854 = vadd.f32 %v801, %v853
        %v855 = vpop.f32.mrb[0].mxu0
        %v856 = vpop.f32.mrb[0].mxu0
        %v857 = vpop.f32.mrb[0].mxu0
        %858 = vdwg.mxu0
        %v859 = vpack.c.bf16 %v854, %v854
        %861 = vrot.lane.b32.xlu0 %v859, 120
        %v862 = vpop.permute.xlu0 %861
        %863 = vrot.lane.b32.xlu0 %v859, 112
        %v864 = vpop.permute.xlu0 %863
        %865 = vrot.lane.b32.xlu0 %v859, 104
        %v866 = vpop.permute.xlu0 %865
        %867 = vrot.lane.b32.xlu0 %v859, 96
        %v868 = vpop.permute.xlu0 %867
        %vm869 = vcmask 64512
        %v871 = vsel %vm869, %v859, 0
        %v874 = vsel %vm869, %v868, 0
        %876 = vmatprep.subr.bf16.mxu0 0
        %877 = vmatpush1.bf16.xpose.msra.mxu0 %v874
        %878 = vmatprep.subr.bf16.mxu0 0
        %879 = vmatpush1.bf16.xpose.msra.mxu0 0
        %880 = vmatprep.subr.bf16.mxu0 0
        %881 = vmatpush1.bf16.xpose.msra.mxu0 0
        %882 = vmatprep.subr.bf16.mxu0 0
        %883 = vmatpush1.bf16.xpose.msra.mxu0 0
        %884 = vmatprep.subr.bf16.mxu0 0
        %885 = vmatpush1.bf16.xpose.msra.mxu0 0
        %886 = vmatprep.subr.bf16.mxu0 0
        %887 = vmatpush1.bf16.xpose.msra.mxu0 0
        %888 = vmatprep.subr.bf16.mxu0 0
        %889 = vmatpush1.bf16.xpose.msra.mxu0 0
        %890 = vmatprep.subr.bf16.mxu0 0
        %891 = vmatpush1.bf16.xpose.msra.mxu0 0
        %892 = vmatprep.subr.bf16.mxu0 0
        %893 = vmatpush1.bf16.xpose.msra.mxu0 0
        %894 = vmatprep.subr.bf16.mxu0 0
        %895 = vmatpush1.bf16.xpose.msra.mxu0 0
        %896 = vmatprep.subr.bf16.mxu0 0
        %897 = vmatpush1.bf16.xpose.msra.mxu0 0
        %898 = vmatprep.subr.bf16.mxu0 0
        %899 = vmatpush1.bf16.xpose.msra.mxu0 0
        %900 = vmatprep.subr.bf16.mxu0 0
        %901 = vmatpush1.bf16.xpose.msra.mxu0 0
        %902 = vmatprep.subr.bf16.mxu0 0
        %903 = vmatpush1.bf16.xpose.msra.mxu0 0
        %904 = vmatprep.subr.bf16.mxu0 0
        %905 = vmatpush1.bf16.xpose.msra.mxu0 0
        %906 = vmatprep.subr.bf16.mxu0 0
        %907 = vmatpush1.bf16.xpose.msra.mxu0 0
        %908 = vmatprep.mubr.bf16.mxu0 0
        %909 = vmatmul.mubr.bf16.gmra.mrb[0].mxu0 %v871
        %v910 = vpop.f32.mrb[0].mxu0
        %v911 = vadd.f32 %v789, %v910
        %v912 = vpop.f32.mrb[0].mxu0
        %v913 = vpop.f32.mrb[0].mxu0
        %v914 = vpop.f32.mrb[0].mxu0
        %915 = vdwg.mxu0
        %916 = vrot.lane.b32.xlu0 %v862, 96
        %v917 = vpop.permute.xlu0 %916
        %v919 = vsel %vm869, %v862, 0
        %v922 = vsel %vm869, %v917, 0
        %924 = vmatprep.subr.bf16.mxu0 0
        %925 = vmatpush1.bf16.xpose.msra.mxu0 %v922
        %926 = vmatprep.subr.bf16.mxu0 0
        %927 = vmatpush1.bf16.xpose.msra.mxu0 0
        %928 = vmatprep.subr.bf16.mxu0 0
        %929 = vmatpush1.bf16.xpose.msra.mxu0 0
        %930 = vmatprep.subr.bf16.mxu0 0
        %931 = vmatpush1.bf16.xpose.msra.mxu0 0
        %932 = vmatprep.subr.bf16.mxu0 0
        %933 = vmatpush1.bf16.xpose.msra.mxu0 0
        %934 = vmatprep.subr.bf16.mxu0 0
        %935 = vmatpush1.bf16.xpose.msra.mxu0 0
        %936 = vmatprep.subr.bf16.mxu0 0
        %937 = vmatpush1.bf16.xpose.msra.mxu0 0
        %938 = vmatprep.subr.bf16.mxu0 0
        %939 = vmatpush1.bf16.xpose.msra.mxu0 0
        %940 = vmatprep.subr.bf16.mxu0 0
        %941 = vmatpush1.bf16.xpose.msra.mxu0 0
        %942 = vmatprep.subr.bf16.mxu0 0
        %943 = vmatpush1.bf16.xpose.msra.mxu0 0
        %944 = vmatprep.subr.bf16.mxu0 0
        %945 = vmatpush1.bf16.xpose.msra.mxu0 0
        %946 = vmatprep.subr.bf16.mxu0 0
        %947 = vmatpush1.bf16.xpose.msra.mxu0 0
        %948 = vmatprep.subr.bf16.mxu0 0
        %949 = vmatpush1.bf16.xpose.msra.mxu0 0
        %950 = vmatprep.subr.bf16.mxu0 0
        %951 = vmatpush1.bf16.xpose.msra.mxu0 0
        %952 = vmatprep.subr.bf16.mxu0 0
        %953 = vmatpush1.bf16.xpose.msra.mxu0 0
        %954 = vmatprep.subr.bf16.mxu0 0
        %955 = vmatpush1.bf16.xpose.msra.mxu0 0
        %956 = vmatprep.mubr.bf16.mxu0 0
        %957 = vmatmul.mubr.bf16.gmra.mrb[0].mxu0 %v919
        %v958 = vpop.f32.mrb[0].mxu0
        %v959 = vadd.f32 %v789, %v958
        %v960 = vpop.f32.mrb[0].mxu0
        %v961 = vpop.f32.mrb[0].mxu0
        %v962 = vpop.f32.mrb[0].mxu0
        %963 = vdwg.mxu0
        %964 = vrot.lane.b32.xlu0 %v864, 96
        %v965 = vpop.permute.xlu0 %964
        %v967 = vsel %vm869, %v864, 0
        %v970 = vsel %vm869, %v965, 0
        %972 = vmatprep.subr.bf16.mxu0 0
        %973 = vmatpush1.bf16.xpose.msra.mxu0 %v970
        %974 = vmatprep.subr.bf16.mxu0 0
        %975 = vmatpush1.bf16.xpose.msra.mxu0 0
        %976 = vmatprep.subr.bf16.mxu0 0
        %977 = vmatpush1.bf16.xpose.msra.mxu0 0
        %978 = vmatprep.subr.bf16.mxu0 0
        %979 = vmatpush1.bf16.xpose.msra.mxu0 0
        %980 = vmatprep.subr.bf16.mxu0 0
        %981 = vmatpush1.bf16.xpose.msra.mxu0 0
        %982 = vmatprep.subr.bf16.mxu0 0
        %983 = vmatpush1.bf16.xpose.msra.mxu0 0
        %984 = vmatprep.subr.bf16.mxu0 0
        %985 = vmatpush1.bf16.xpose.msra.mxu0 0
        %986 = vmatprep.subr.bf16.mxu0 0
        %987 = vmatpush1.bf16.xpose.msra.mxu0 0
        %988 = vmatprep.subr.bf16.mxu0 0
        %989 = vmatpush1.bf16.xpose.msra.mxu0 0
        %990 = vmatprep.subr.bf16.mxu0 0
        %991 = vmatpush1.bf16.xpose.msra.mxu0 0
        %992 = vmatprep.subr.bf16.mxu0 0
        %993 = vmatpush1.bf16.xpose.msra.mxu0 0
        %994 = vmatprep.subr.bf16.mxu0 0
        %995 = vmatpush1.bf16.xpose.msra.mxu0 0
        %996 = vmatprep.subr.bf16.mxu0 0
        %997 = vmatpush1.bf16.xpose.msra.mxu0 0
        %998 = vmatprep.subr.bf16.mxu0 0
        %999 = vmatpush1.bf16.xpose.msra.mxu0 0
        %1000 = vmatprep.subr.bf16.mxu0 0
        %1001 = vmatpush1.bf16.xpose.msra.mxu0 0
        %1002 = vmatprep.subr.bf16.mxu0 0
        %1003 = vmatpush1.bf16.xpose.msra.mxu0 0
        %1004 = vmatprep.mubr.bf16.mxu0 0
        %1005 = vmatmul.mubr.bf16.gmra.mrb[0].mxu0 %v967
        %v1006 = vpop.f32.mrb[0].mxu0
        %v1007 = vadd.f32 %v789, %v1006
        %v1008 = vpop.f32.mrb[0].mxu0
        %v1009 = vpop.f32.mrb[0].mxu0
        %v1010 = vpop.f32.mrb[0].mxu0
        %1011 = vdwg.mxu0
        %1012 = vrot.lane.b32.xlu0 %v866, 96
        %v1013 = vpop.permute.xlu0 %1012
        %v1015 = vsel %vm869, %v866, 0
        %v1018 = vsel %vm869, %v1013, 0
        %1020 = vmatprep.subr.bf16.mxu0 0
        %1021 = vmatpush1.bf16.xpose.msra.mxu0 %v1018
        %1022 = vmatprep.subr.bf16.mxu0 0
        %1023 = vmatpush1.bf16.xpose.msra.mxu0 0
        %1024 = vmatprep.subr.bf16.mxu0 0
        %1025 = vmatpush1.bf16.xpose.msra.mxu0 0
        %1026 = vmatprep.subr.bf16.mxu0 0
        %1027 = vmatpush1.bf16.xpose.msra.mxu0 0
        %1028 = vmatprep.subr.bf16.mxu0 0
        %1029 = vmatpush1.bf16.xpose.msra.mxu0 0
        %1030 = vmatprep.subr.bf16.mxu0 0
        %1031 = vmatpush1.bf16.xpose.msra.mxu0 0
        %1032 = vmatprep.subr.bf16.mxu0 0
        %1033 = vmatpush1.bf16.xpose.msra.mxu0 0
        %1034 = vmatprep.subr.bf16.mxu0 0
        %1035 = vmatpush1.bf16.xpose.msra.mxu0 0
        %1036 = vmatprep.subr.bf16.mxu0 0
        %1037 = vmatpush1.bf16.xpose.msra.mxu0 0
        %1038 = vmatprep.subr.bf16.mxu0 0
        %1039 = vmatpush1.bf16.xpose.msra.mxu0 0
        %1040 = vmatprep.subr.bf16.mxu0 0
        %1041 = vmatpush1.bf16.xpose.msra.mxu0 0
        %1042 = vmatprep.subr.bf16.mxu0 0
        %1043 = vmatpush1.bf16.xpose.msra.mxu0 0
        %1044 = vmatprep.subr.bf16.mxu0 0
        %1045 = vmatpush1.bf16.xpose.msra.mxu0 0
        %1046 = vmatprep.subr.bf16.mxu0 0
        %1047 = vmatpush1.bf16.xpose.msra.mxu0 0
        %1048 = vmatprep.subr.bf16.mxu0 0
        %1049 = vmatpush1.bf16.xpose.msra.mxu0 0
        %1050 = vmatprep.subr.bf16.mxu0 0
        %1051 = vmatpush1.bf16.xpose.msra.mxu0 0
        %1052 = vmatprep.mubr.bf16.mxu0 0
        %1053 = vmatmul.mubr.bf16.gmra.mrb[0].mxu0 %v1015
        %v1054 = vpop.f32.mrb[0].mxu0
        %v1055 = vadd.f32 %v789, %v1054
        %v1056 = vpop.f32.mrb[0].mxu0
        %v1057 = vpop.f32.mrb[0].mxu0
        %v1058 = vpop.f32.mrb[0].mxu0
        %1059 = vdwg.mxu0
        %v1060 = vsel %vm869, %v911, -inf
        %1061 = vmax.xlane.f32.xlu0 %v1060
        %v1062 = vpop.xlane.xlu0 %1061
        %v1063 = vsel %vm869, %v959, -inf
        %1064 = vmax.xlane.f32.xlu0 %v1063
        %v1065 = vpop.xlane.xlu0 %1064
        %v1066 = vsel %vm869, %v1007, -inf
        %1067 = vmax.xlane.f32.xlu0 %v1066
        %v1068 = vpop.xlane.xlu0 %1067
        %v1069 = vsel %vm869, %v1055, -inf
        %1070 = vmax.xlane.f32.xlu0 %v1069
        %v1071 = vpop.xlane.xlu0 %1070
        %v1072 = vsub.f32 %v911, %v1062
        %v1073 = vsub.f32 %v959, %v1065
        %v1074 = vsub.f32 %v1007, %v1068
        %v1075 = vsub.f32 %v1055, %v1071
        %v1076 = vmul.f32 %v1072, 1.442695
        %v1077 = vpow.pop %v1076
        %v1078 = vmul.f32 %v1073, 1.442695
        %v1079 = vpow.pop %v1078
        %v1080 = vmul.f32 %v1074, 1.442695
        %v1081 = vpow.pop %v1080
        %v1082 = vmul.f32 %v1075, 1.442695
        %v1083 = vpow.pop %v1082
        %v1084 = vsel %vm869, %v1077, 0.0
        %1085 = vadd.xlane.f32.xlu0 %v1084
        %v1086 = vpop.xlane.xlu0 %1085
        %v1087 = vsel %vm869, %v1079, 0.0
        %1088 = vadd.xlane.f32.xlu0 %v1087
        %v1089 = vpop.xlane.xlu0 %1088
        %v1090 = vsel %vm869, %v1081, 0.0
        %1091 = vadd.xlane.f32.xlu0 %v1090
        %v1092 = vpop.xlane.xlu0 %1091
        %v1093 = vsel %vm869, %v1083, 0.0
        %1094 = vadd.xlane.f32.xlu0 %v1093
        %v1095 = vpop.xlane.xlu0 %1094
        %v1096 = vrcp.pop %v1086
        %v1097 = vrcp.pop %v1089
        %v1098 = vrcp.pop %v1092
        %v1099 = vrcp.pop %v1095
        %v1100 = vmul.f32 %v1077, %v1096
        %v1101 = vmul.f32 %v1079, %v1097
        %v1102 = vmul.f32 %v1081, %v1098
        %v1103 = vmul.f32 %v1083, %v1099
        %v1104 = vpack.c.bf16 %v1100, %v1100
        %v1105 = vpack.c.bf16 %v1101, %v1101
        %v1106 = vpack.c.bf16 %v1102, %v1102
        %v1107 = vpack.c.bf16 %v1103, %v1103
        %1108 = vrot.lane.b32.xlu0 %v859, 64
        %v1109 = vpop.permute.xlu0 %1108
        %v1111 = vsel %vm869, %v1104, 0
        %vm1113 = vcmask 1043456
        %v1115 = vsel %vm1113, %v1109, 0
        %1117 = vmatprep.subr.bf16.mxu0 0
        %1118 = vmatpush1.bf16.msra.mxu0 %v1115
        %1119 = vmatprep.subr.bf16.mxu0 0
        %1120 = vmatpush1.bf16.msra.mxu0 0
        %1121 = vmatprep.subr.bf16.mxu0 0
        %1122 = vmatpush1.bf16.msra.mxu0 0
        %1123 = vmatprep.subr.bf16.mxu0 0
        %1124 = vmatpush1.bf16.msra.mxu0 0
        %1125 = vmatprep.subr.bf16.mxu0 0
        %1126 = vmatpush1.bf16.msra.mxu0 0
        %1127 = vmatprep.subr.bf16.mxu0 0
        %1128 = vmatpush1.bf16.msra.mxu0 0
        %1129 = vmatprep.subr.bf16.mxu0 0
        %1130 = vmatpush1.bf16.msra.mxu0 0
        %1131 = vmatprep.subr.bf16.mxu0 0
        %1132 = vmatpush1.bf16.msra.mxu0 0
        %1133 = vmatprep.subr.bf16.mxu0 0
        %1134 = vmatpush1.bf16.msra.mxu0 0
        %1135 = vmatprep.subr.bf16.mxu0 0
        %1136 = vmatpush1.bf16.msra.mxu0 0
        %1137 = vmatprep.subr.bf16.mxu0 0
        %1138 = vmatpush1.bf16.msra.mxu0 0
        %1139 = vmatprep.subr.bf16.mxu0 0
        %1140 = vmatpush1.bf16.msra.mxu0 0
        %1141 = vmatprep.subr.bf16.mxu0 0
        %1142 = vmatpush1.bf16.msra.mxu0 0
        %1143 = vmatprep.subr.bf16.mxu0 0
        %1144 = vmatpush1.bf16.msra.mxu0 0
        %1145 = vmatprep.subr.bf16.mxu0 0
        %1146 = vmatpush1.bf16.msra.mxu0 0
        %1147 = vmatprep.subr.bf16.mxu0 0
        %1148 = vmatpush1.bf16.msra.mxu0 0
        %1149 = vmatprep.mubr.bf16.mxu0 0
        %1150 = vmatmul.mubr.bf16.gmra.mrb[0].mxu0 %v1111
        %v1151 = vpop.f32.mrb[0].mxu0
        %v1152 = vadd.f32 0.0, %v1151
        %v1153 = vpop.f32.mrb[0].mxu0
        %v1154 = vpop.f32.mrb[0].mxu0
        %v1155 = vpop.f32.mrb[0].mxu0
        %1156 = vdwg.mxu0
        %1157 = vrot.lane.b32.xlu0 %v862, 64
        %v1158 = vpop.permute.xlu0 %1157
        %v1160 = vsel %vm869, %v1105, 0
        %v1163 = vsel %vm1113, %v1158, 0
        %1165 = vmatprep.subr.bf16.mxu0 0
        %1166 = vmatpush1.bf16.msra.mxu0 %v1163
        %1167 = vmatprep.subr.bf16.mxu0 0
        %1168 = vmatpush1.bf16.msra.mxu0 0
        %1169 = vmatprep.subr.bf16.mxu0 0
        %1170 = vmatpush1.bf16.msra.mxu0 0
        %1171 = vmatprep.subr.bf16.mxu0 0
        %1172 = vmatpush1.bf16.msra.mxu0 0
        %1173 = vmatprep.subr.bf16.mxu0 0
        %1174 = vmatpush1.bf16.msra.mxu0 0
        %1175 = vmatprep.subr.bf16.mxu0 0
        %1176 = vmatpush1.bf16.msra.mxu0 0
        %1177 = vmatprep.subr.bf16.mxu0 0
        %1178 = vmatpush1.bf16.msra.mxu0 0
        %1179 = vmatprep.subr.bf16.mxu0 0
        %1180 = vmatpush1.bf16.msra.mxu0 0
        %1181 = vmatprep.subr.bf16.mxu0 0
        %1182 = vmatpush1.bf16.msra.mxu0 0
        %1183 = vmatprep.subr.bf16.mxu0 0
        %1184 = vmatpush1.bf16.msra.mxu0 0
        %1185 = vmatprep.subr.bf16.mxu0 0
        %1186 = vmatpush1.bf16.msra.mxu0 0
        %1187 = vmatprep.subr.bf16.mxu0 0
        %1188 = vmatpush1.bf16.msra.mxu0 0
        %1189 = vmatprep.subr.bf16.mxu0 0
        %1190 = vmatpush1.bf16.msra.mxu0 0
        %1191 = vmatprep.subr.bf16.mxu0 0
        %1192 = vmatpush1.bf16.msra.mxu0 0
        %1193 = vmatprep.subr.bf16.mxu0 0
        %1194 = vmatpush1.bf16.msra.mxu0 0
        %1195 = vmatprep.subr.bf16.mxu0 0
        %1196 = vmatpush1.bf16.msra.mxu0 0
        %1197 = vmatprep.mubr.bf16.mxu0 0
        %1198 = vmatmul.mubr.bf16.gmra.mrb[0].mxu0 %v1160
        %v1199 = vpop.f32.mrb[0].mxu0
        %v1200 = vadd.f32 0.0, %v1199
        %v1201 = vpop.f32.mrb[0].mxu0
        %v1202 = vpop.f32.mrb[0].mxu0
        %v1203 = vpop.f32.mrb[0].mxu0
        %1204 = vdwg.mxu0
        %1205 = vrot.lane.b32.xlu0 %v864, 64
        %v1206 = vpop.permute.xlu0 %1205
        %v1208 = vsel %vm869, %v1106, 0
        %v1211 = vsel %vm1113, %v1206, 0
        %1213 = vmatprep.subr.bf16.mxu0 0
        %1214 = vmatpush1.bf16.msra.mxu0 %v1211
        %1215 = vmatprep.subr.bf16.mxu0 0
        %1216 = vmatpush1.bf16.msra.mxu0 0
        %1217 = vmatprep.subr.bf16.mxu0 0
        %1218 = vmatpush1.bf16.msra.mxu0 0
        %1219 = vmatprep.subr.bf16.mxu0 0
        %1220 = vmatpush1.bf16.msra.mxu0 0
        %1221 = vmatprep.subr.bf16.mxu0 0
        %1222 = vmatpush1.bf16.msra.mxu0 0
        %1223 = vmatprep.subr.bf16.mxu0 0
        %1224 = vmatpush1.bf16.msra.mxu0 0
        %1225 = vmatprep.subr.bf16.mxu0 0
        %1226 = vmatpush1.bf16.msra.mxu0 0
        %1227 = vmatprep.subr.bf16.mxu0 0
        %1228 = vmatpush1.bf16.msra.mxu0 0
        %1229 = vmatprep.subr.bf16.mxu0 0
        %1230 = vmatpush1.bf16.msra.mxu0 0
        %1231 = vmatprep.subr.bf16.mxu0 0
        %1232 = vmatpush1.bf16.msra.mxu0 0
        %1233 = vmatprep.subr.bf16.mxu0 0
        %1234 = vmatpush1.bf16.msra.mxu0 0
        %1235 = vmatprep.subr.bf16.mxu0 0
        %1236 = vmatpush1.bf16.msra.mxu0 0
        %1237 = vmatprep.subr.bf16.mxu0 0
        %1238 = vmatpush1.bf16.msra.mxu0 0
        %1239 = vmatprep.subr.bf16.mxu0 0
        %1240 = vmatpush1.bf16.msra.mxu0 0
        %1241 = vmatprep.subr.bf16.mxu0 0
        %1242 = vmatpush1.bf16.msra.mxu0 0
        %1243 = vmatprep.subr.bf16.mxu0 0
        %1244 = vmatpush1.bf16.msra.mxu0 0
        %1245 = vmatprep.mubr.bf16.mxu0 0
        %1246 = vmatmul.mubr.bf16.gmra.mrb[0].mxu0 %v1208
        %v1247 = vpop.f32.mrb[0].mxu0
        %v1248 = vadd.f32 0.0, %v1247
        %v1249 = vpop.f32.mrb[0].mxu0
        %v1250 = vpop.f32.mrb[0].mxu0
        %v1251 = vpop.f32.mrb[0].mxu0
        %1252 = vdwg.mxu0
        %1253 = vrot.lane.b32.xlu0 %v866, 64
        %v1254 = vpop.permute.xlu0 %1253
        %v1256 = vsel %vm869, %v1107, 0
        %v1259 = vsel %vm1113, %v1254, 0
        %1261 = vmatprep.subr.bf16.mxu0 0
        %1262 = vmatpush1.bf16.msra.mxu0 %v1259
        %1263 = vmatprep.subr.bf16.mxu0 0
        %1264 = vmatpush1.bf16.msra.mxu0 0
        %1265 = vmatprep.subr.bf16.mxu0 0
        %1266 = vmatpush1.bf16.msra.mxu0 0
        %1267 = vmatprep.subr.bf16.mxu0 0
        %1268 = vmatpush1.bf16.msra.mxu0 0
        %1269 = vmatprep.subr.bf16.mxu0 0
        %1270 = vmatpush1.bf16.msra.mxu0 0
        %1271 = vmatprep.subr.bf16.mxu0 0
        %1272 = vmatpush1.bf16.msra.mxu0 0
        %1273 = vmatprep.subr.bf16.mxu0 0
        %1274 = vmatpush1.bf16.msra.mxu0 0
        %1275 = vmatprep.subr.bf16.mxu0 0
        %1276 = vmatpush1.bf16.msra.mxu0 0
        %1277 = vmatprep.subr.bf16.mxu0 0
        %1278 = vmatpush1.bf16.msra.mxu0 0
        %1279 = vmatprep.subr.bf16.mxu0 0
        %1280 = vmatpush1.bf16.msra.mxu0 0
        %1281 = vmatprep.subr.bf16.mxu0 0
        %1282 = vmatpush1.bf16.msra.mxu0 0
        %1283 = vmatprep.subr.bf16.mxu0 0
        %1284 = vmatpush1.bf16.msra.mxu0 0
        %1285 = vmatprep.subr.bf16.mxu0 0
        %1286 = vmatpush1.bf16.msra.mxu0 0
        %1287 = vmatprep.subr.bf16.mxu0 0
        %1288 = vmatpush1.bf16.msra.mxu0 0
        %1289 = vmatprep.subr.bf16.mxu0 0
        %1290 = vmatpush1.bf16.msra.mxu0 0
        %1291 = vmatprep.subr.bf16.mxu0 0
        %1292 = vmatpush1.bf16.msra.mxu0 0
        %1293 = vmatprep.mubr.bf16.mxu0 0
        %1294 = vmatmul.mubr.bf16.gmra.mrb[0].mxu0 %v1256
        %v1295 = vpop.f32.mrb[0].mxu0
        %v1296 = vadd.f32 0.0, %v1295
        %v1297 = vpop.f32.mrb[0].mxu0
        %v1298 = vpop.f32.mrb[0].mxu0
        %v1299 = vpop.f32.mrb[0].mxu0
        %1300 = vdwg.mxu0
        %1302 = vrot.lane.b32.xlu0 %v1200, 8
        %v1303 = vpop.permute.xlu0 %1302
        %1306 = vrot.lane.b32.xlu0 %v1248, 16
        %v1307 = vpop.permute.xlu0 %1306
        %1310 = vrot.lane.b32.xlu0 %v1296, 24
        %v1311 = vpop.permute.xlu0 %1310
        %v1313 = vsel %vm869, %v1152, %v1303
        %vm1314 = vcmask 130048
        %v1315 = vsel %vm1314, %v1313, %v1307
        %vm1316 = vcmask 195584
        %v1317 = vsel %vm1316, %v1315, %v1311
        %v1318 = vld [vmem:[#allocation8] sm:$0xf]
        %v1319 = vld [vmem:[#allocation8 + $0x4] sm:$0xf]
        %v1320 = vld [vmem:[#allocation8 + $0x8] sm:$0xf]
        %v1321 = vld [vmem:[#allocation8 + $0xc] sm:$0xf]
        %v1322 = vpack.c.bf16 %v1317, %v1317
        %v1323 = vld [vmem:[#allocation10] sm:$0x1]
        %v1325 = vlaneseq
        %v1326 = vshrl.u32 %v1325, 7
        %v1327 = vsub.s32 0, %v1326
        %v1328 = vrot.slane %v1323, %v1327
        %v1334 = vunpack.c.l.b16 %v1318
        %v1335 = vunpack.c.l.b16 %v1319
        %v1336 = vunpack.c.l.b16 %v1320
        %v1337 = vunpack.c.l.b16 %v1321
        %v1338 = vpack.c.b16 %v1335, %v1334
        %v1339 = vpack.c.b16 %v1337, %v1336
        %v1343 = vsel %vm815, %v1322, 0
        %1345 = vmatprep.subr.bf16.mxu0 0
        %1346 = vmatpush1.bf16.msra.mxu0 %v1338
        %1347 = vmatprep.subr.bf16.mxu0 0
        %1348 = vmatpush1.bf16.msra.mxu0 %v1339
        %1349 = vmatprep.subr.bf16.mxu0 0
        %1350 = vmatpush1.bf16.msra.mxu0 0
        %1351 = vmatprep.subr.bf16.mxu0 0
        %1352 = vmatpush1.bf16.msra.mxu0 0
        %1353 = vmatprep.subr.bf16.mxu0 0
        %1354 = vmatpush1.bf16.msra.mxu0 0
        %1355 = vmatprep.subr.bf16.mxu0 0
        %1356 = vmatpush1.bf16.msra.mxu0 0
        %1357 = vmatprep.subr.bf16.mxu0 0
        %1358 = vmatpush1.bf16.msra.mxu0 0
        %1359 = vmatprep.subr.bf16.mxu0 0
        %1360 = vmatpush1.bf16.msra.mxu0 0
        %1361 = vmatprep.subr.bf16.mxu0 0
        %1362 = vmatpush1.bf16.msra.mxu0 0
        %1363 = vmatprep.subr.bf16.mxu0 0
        %1364 = vmatpush1.bf16.msra.mxu0 0
        %1365 = vmatprep.subr.bf16.mxu0 0
        %1366 = vmatpush1.bf16.msra.mxu0 0
        %1367 = vmatprep.subr.bf16.mxu0 0
        %1368 = vmatpush1.bf16.msra.mxu0 0
        %1369 = vmatprep.subr.bf16.mxu0 0
        %1370 = vmatpush1.bf16.msra.mxu0 0
        %1371 = vmatprep.subr.bf16.mxu0 0
        %1372 = vmatpush1.bf16.msra.mxu0 0
        %1373 = vmatprep.subr.bf16.mxu0 0
        %1374 = vmatpush1.bf16.msra.mxu0 0
        %1375 = vmatprep.subr.bf16.mxu0 0
        %1376 = vmatpush1.bf16.msra.mxu0 0
        %1377 = vmatprep.mubr.bf16.mxu0 0
        %1378 = vmatmul.mubr.bf16.gmra.mrb[0].mxu0 %v1343
        %v1379 = vpop.f32.mrb[0].mxu0
        %v1380 = vadd.f32 %v1328, %v1379
        %v1381 = vpop.f32.mrb[0].mxu0
        %v1382 = vpop.f32.mrb[0].mxu0
        %v1383 = vpop.f32.mrb[0].mxu0
        %1384 = vdwg.mxu0
        %v1385 = vadd.f32 %v787, %v1380
        %v1386 = vld [vmem:[%s18] sm:$0x1]
        %v1387 = vld [vmem:[%s19] sm:$0x1]
        %v1388 = vsel %vm815, %v1385, 0.0
        %1389 = vadd.xlane.f32.xlu0 %v1388
        %v1390 = vpop.xlane.xlu0 %1389
        %v1391 = vrcp.pop 32.0
        %v1392 = vmul.f32 %v1390, %v1391
        %v1393 = vsub.f32 %v1385, %v1392
        %v1394 = vmul.f32 %v1393, %v1393
        %v1395 = vsel %vm815, %v1394, 0.0
        %1396 = vadd.xlane.f32.xlu0 %v1395
        %v1397 = vpop.xlane.xlu0 %1396
        %v1398 = vmul.f32 %v1397, %v1391
        %v1399 = vadd.f32 %v1398, 1e-05
        %v1400 = vrsqrt.pop %v1399
        %v1401 = vmul.f32 %v1393, %v1400
        %v1402 = vlaneseq
        %v1403 = vshrl.u32 %v1402, 7
        %v1404 = vsub.s32 0, %v1403
        %v1405 = vrot.slane %v1386, %v1404
        %v1406 = vmul.f32 %v1401, %v1405
        %v1407 = vlaneseq
        %v1408 = vshrl.u32 %v1407, 7
        %v1409 = vsub.s32 0, %v1408
        %v1410 = vrot.slane %v1387, %v1409
        %v1411 = vadd.f32 %v1406, %v1410
        %v1412 = vld [vmem:[#allocation11] sm:$0xf]
        %v1413 = vld [vmem:[#allocation11 + $0x4] sm:$0xf]
        %v1414 = vld [vmem:[#allocation11 + $0x8] sm:$0xf]
        %v1415 = vld [vmem:[#allocation11 + $0xc] sm:$0xf]
        %v1416 = vpack.c.bf16 %v1411, %v1411
        %v1417 = vld [vmem:[#allocation13] sm:$0x1]
        %v1419 = vlaneseq
        %v1420 = vshrl.u32 %v1419, 7
        %v1421 = vsub.s32 0, %v1420
        %v1422 = vrot.slane %v1417, %v1421
        %v1428 = vunpack.c.l.b16 %v1412
        %v1429 = vunpack.c.l.b16 %v1413
        %v1430 = vunpack.c.l.b16 %v1414
        %v1431 = vunpack.c.l.b16 %v1415
        %v1432 = vpack.c.b16 %v1429, %v1428
        %v1433 = vpack.c.b16 %v1431, %v1430
        %v1437 = vsel %vm815, %v1416, 0
        %1439 = vmatprep.subr.bf16.mxu0 0
        %1440 = vmatpush1.bf16.msra.mxu0 %v1432
        %1441 = vmatprep.subr.bf16.mxu0 0
        %1442 = vmatpush1.bf16.msra.mxu0 %v1433
        %1443 = vmatprep.subr.bf16.mxu0 0
        %1444 = vmatpush1.bf16.msra.mxu0 0
        %1445 = vmatprep.subr.bf16.mxu0 0
        %1446 = vmatpush1.bf16.msra.mxu0 0
        %1447 = vmatprep.subr.bf16.mxu0 0
        %1448 = vmatpush1.bf16.msra.mxu0 0
        %1449 = vmatprep.subr.bf16.mxu0 0
        %1450 = vmatpush1.bf16.msra.mxu0 0
        %1451 = vmatprep.subr.bf16.mxu0 0
        %1452 = vmatpush1.bf16.msra.mxu0 0
        %1453 = vmatprep.subr.bf16.mxu0 0
        %1454 = vmatpush1.bf16.msra.mxu0 0
        %1455 = vmatprep.subr.bf16.mxu0 0
        %1456 = vmatpush1.bf16.msra.mxu0 0
        %1457 = vmatprep.subr.bf16.mxu0 0
        %1458 = vmatpush1.bf16.msra.mxu0 0
        %1459 = vmatprep.subr.bf16.mxu0 0
        %1460 = vmatpush1.bf16.msra.mxu0 0
        %1461 = vmatprep.subr.bf16.mxu0 0
        %1462 = vmatpush1.bf16.msra.mxu0 0
        %1463 = vmatprep.subr.bf16.mxu0 0
        %1464 = vmatpush1.bf16.msra.mxu0 0
        %1465 = vmatprep.subr.bf16.mxu0 0
        %1466 = vmatpush1.bf16.msra.mxu0 0
        %1467 = vmatprep.subr.bf16.mxu0 0
        %1468 = vmatpush1.bf16.msra.mxu0 0
        %1469 = vmatprep.subr.bf16.mxu0 0
        %1470 = vmatpush1.bf16.msra.mxu0 0
        %1471 = vmatprep.mubr.bf16.mxu0 0
        %1472 = vmatmul.mubr.bf16.gmra.mrb[0].mxu0 %v1437
        %v1473 = vpop.f32.mrb[0].mxu0
        %v1474 = vadd.f32 %v1422, %v1473
        %v1475 = vpop.f32.mrb[0].mxu0
        %v1476 = vpop.f32.mrb[0].mxu0
        %v1477 = vpop.f32.mrb[0].mxu0
        %1478 = vdwg.mxu0
        %v1479 = vld [vmem:[%s10] sm:$0xf]
        %v1480 = vld [vmem:[%s10 + $0x4] sm:$0xf]
        %v1481 = vld [vmem:[%s10 + $0x8] sm:$0xf]
        %v1482 = vld [vmem:[%s10 + $0xc] sm:$0xf]
        %v1483 = vpack.c.bf16 %v788, %v788
        %v1484 = vld [vmem:[#allocation14] sm:$0x1]
        %v1486 = vlaneseq
        %v1487 = vshrl.u32 %v1486, 7
        %v1488 = vsub.s32 0, %v1487
        %v1489 = vrot.slane %v1484, %v1488
        %v1495 = vunpack.c.l.b16 %v1479
        %v1496 = vunpack.c.l.b16 %v1480
        %v1497 = vunpack.c.l.b16 %v1481
        %v1498 = vunpack.c.l.b16 %v1482
        %v1499 = vpack.c.b16 %v1496, %v1495
        %v1500 = vpack.c.b16 %v1498, %v1497
        %v1504 = vsel %vm815, %v1483, 0
        %1506 = vmatprep.subr.bf16.mxu0 0
        %1507 = vmatpush1.bf16.msra.mxu0 %v1499
        %1508 = vmatprep.subr.bf16.mxu0 0
        %1509 = vmatpush1.bf16.msra.mxu0 %v1500
        %1510 = vmatprep.subr.bf16.mxu0 0
        %1511 = vmatpush1.bf16.msra.mxu0 0
        %1512 = vmatprep.subr.bf16.mxu0 0
        %1513 = vmatpush1.bf16.msra.mxu0 0
        %1514 = vmatprep.subr.bf16.mxu0 0
        %1515 = vmatpush1.bf16.msra.mxu0 0
        %1516 = vmatprep.subr.bf16.mxu0 0
        %1517 = vmatpush1.bf16.msra.mxu0 0
        %1518 = vmatprep.subr.bf16.mxu0 0
        %1519 = vmatpush1.bf16.msra.mxu0 0
        %1520 = vmatprep.subr.bf16.mxu0 0
        %1521 = vmatpush1.bf16.msra.mxu0 0
        %1522 = vmatprep.subr.bf16.mxu0 0
        %1523 = vmatpush1.bf16.msra.mxu0 0
        %1524 = vmatprep.subr.bf16.mxu0 0
        %1525 = vmatpush1.bf16.msra.mxu0 0
        %1526 = vmatprep.subr.bf16.mxu0 0
        %1527 = vmatpush1.bf16.msra.mxu0 0
        %1528 = vmatprep.subr.bf16.mxu0 0
        %1529 = vmatpush1.bf16.msra.mxu0 0
        %1530 = vmatprep.subr.bf16.mxu0 0
        %1531 = vmatpush1.bf16.msra.mxu0 0
        %1532 = vmatprep.subr.bf16.mxu0 0
        %1533 = vmatpush1.bf16.msra.mxu0 0
        %1534 = vmatprep.subr.bf16.mxu0 0
        %1535 = vmatpush1.bf16.msra.mxu0 0
        %1536 = vmatprep.subr.bf16.mxu0 0
        %1537 = vmatpush1.bf16.msra.mxu0 0
        %1538 = vmatprep.mubr.bf16.mxu0 0
        %1539 = vmatmul.mubr.bf16.gmra.mrb[0].mxu0 %v1504
        %v1540 = vpop.f32.mrb[0].mxu0
        %v1541 = vadd.f32 %v1489, %v1540
        %v1542 = vpop.f32.mrb[0].mxu0
        %v1543 = vpop.f32.mrb[0].mxu0
        %v1544 = vpop.f32.mrb[0].mxu0
        %1545 = vdwg.mxu0
        %v1546 = vpack.c.bf16 %v1474, %v1474
        %1548 = vrot.lane.b32.xlu0 %v1546, 120
        %v1549 = vpop.permute.xlu0 %1548
        %1550 = vrot.lane.b32.xlu0 %v1546, 112
        %v1551 = vpop.permute.xlu0 %1550
        %1552 = vrot.lane.b32.xlu0 %v1546, 104
        %v1553 = vpop.permute.xlu0 %1552
        %v1554 = vpack.c.bf16 %v1541, %v1541
        %1556 = vrot.lane.b32.xlu0 %v1554, 120
        %v1557 = vpop.permute.xlu0 %1556
        %1558 = vrot.lane.b32.xlu0 %v1554, 112
        %v1559 = vpop.permute.xlu0 %1558
        %1560 = vrot.lane.b32.xlu0 %v1554, 104
        %v1561 = vpop.permute.xlu0 %1560
        %v1563 = vsel %vm869, %v1546, 0
        %v1566 = vsel %vm869, %v1554, 0
        %1568 = vmatprep.subr.bf16.mxu0 0
        %1569 = vmatpush1.bf16.xpose.msra.mxu0 %v1566
        %1570 = vmatprep.subr.bf16.mxu0 0
        %1571 = vmatpush1.bf16.xpose.msra.mxu0 0
        %1572 = vmatprep.subr.bf16.mxu0 0
        %1573 = vmatpush1.bf16.xpose.msra.mxu0 0
        %1574 = vmatprep.subr.bf16.mxu0 0
        %1575 = vmatpush1.bf16.xpose.msra.mxu0 0
        %1576 = vmatprep.subr.bf16.mxu0 0
        %1577 = vmatpush1.bf16.xpose.msra.mxu0 0
        %1578 = vmatprep.subr.bf16.mxu0 0
        %1579 = vmatpush1.bf16.xpose.msra.mxu0 0
        %1580 = vmatprep.subr.bf16.mxu0 0
        %1581 = vmatpush1.bf16.xpose.msra.mxu0 0
        %1582 = vmatprep.subr.bf16.mxu0 0
        %1583 = vmatpush1.bf16.xpose.msra.mxu0 0
        %1584 = vmatprep.subr.bf16.mxu0 0
        %1585 = vmatpush1.bf16.xpose.msra.mxu0 0
        %1586 = vmatprep.subr.bf16.mxu0 0
        %1587 = vmatpush1.bf16.xpose.msra.mxu0 0
        %1588 = vmatprep.subr.bf16.mxu0 0
        %1589 = vmatpush1.bf16.xpose.msra.mxu0 0
        %1590 = vmatprep.subr.bf16.mxu0 0
        %1591 = vmatpush1.bf16.xpose.msra.mxu0 0
        %1592 = vmatprep.subr.bf16.mxu0 0
        %1593 = vmatpush1.bf16.xpose.msra.mxu0 0
        %1594 = vmatprep.subr.bf16.mxu0 0
        %1595 = vmatpush1.bf16.xpose.msra.mxu0 0
        %1596 = vmatprep.subr.bf16.mxu0 0
        %1597 = vmatpush1.bf16.xpose.msra.mxu0 0
        %1598 = vmatprep.subr.bf16.mxu0 0
        %1599 = vmatpush1.bf16.xpose.msra.mxu0 0
        %1600 = vmatprep.mubr.bf16.mxu0 0
        %1601 = vmatmul.mubr.bf16.gmra.mrb[0].mxu0 %v1563
        %v1602 = vpop.f32.mrb[0].mxu0
        %v1603 = vadd.f32 %v790, %v1602
        %v1604 = vpop.f32.mrb[0].mxu0
        %v1605 = vpop.f32.mrb[0].mxu0
        %v1606 = vpop.f32.mrb[0].mxu0
        %1607 = vdwg.mxu0
        %v1609 = vsel %vm869, %v1549, 0
        %v1612 = vsel %vm869, %v1557, 0
        %1614 = vmatprep.subr.bf16.mxu0 0
        %1615 = vmatpush1.bf16.xpose.msra.mxu0 %v1612
        %1616 = vmatprep.subr.bf16.mxu0 0
        %1617 = vmatpush1.bf16.xpose.msra.mxu0 0
        %1618 = vmatprep.subr.bf16.mxu0 0
        %1619 = vmatpush1.bf16.xpose.msra.mxu0 0
        %1620 = vmatprep.subr.bf16.mxu0 0
        %1621 = vmatpush1.bf16.xpose.msra.mxu0 0
        %1622 = vmatprep.subr.bf16.mxu0 0
        %1623 = vmatpush1.bf16.xpose.msra.mxu0 0
        %1624 = vmatprep.subr.bf16.mxu0 0
        %1625 = vmatpush1.bf16.xpose.msra.mxu0 0
        %1626 = vmatprep.subr.bf16.mxu0 0
        %1627 = vmatpush1.bf16.xpose.msra.mxu0 0
        %1628 = vmatprep.subr.bf16.mxu0 0
        %1629 = vmatpush1.bf16.xpose.msra.mxu0 0
        %1630 = vmatprep.subr.bf16.mxu0 0
        %1631 = vmatpush1.bf16.xpose.msra.mxu0 0
        %1632 = vmatprep.subr.bf16.mxu0 0
        %1633 = vmatpush1.bf16.xpose.msra.mxu0 0
        %1634 = vmatprep.subr.bf16.mxu0 0
        %1635 = vmatpush1.bf16.xpose.msra.mxu0 0
        %1636 = vmatprep.subr.bf16.mxu0 0
        %1637 = vmatpush1.bf16.xpose.msra.mxu0 0
        %1638 = vmatprep.subr.bf16.mxu0 0
        %1639 = vmatpush1.bf16.xpose.msra.mxu0 0
        %1640 = vmatprep.subr.bf16.mxu0 0
        %1641 = vmatpush1.bf16.xpose.msra.mxu0 0
        %1642 = vmatprep.subr.bf16.mxu0 0
        %1643 = vmatpush1.bf16.xpose.msra.mxu0 0
        %1644 = vmatprep.subr.bf16.mxu0 0
        %1645 = vmatpush1.bf16.xpose.msra.mxu0 0
        %1646 = vmatprep.mubr.bf16.mxu0 0
        %1647 = vmatmul.mubr.bf16.gmra.mrb[0].mxu0 %v1609
        %v1648 = vpop.f32.mrb[0].mxu0
        %v1649 = vadd.f32 %v790, %v1648
        %v1650 = vpop.f32.mrb[0].mxu0
        %v1651 = vpop.f32.mrb[0].mxu0
        %v1652 = vpop.f32.mrb[0].mxu0
        %1653 = vdwg.mxu0
        %v1655 = vsel %vm869, %v1551, 0
        %v1658 = vsel %vm869, %v1559, 0
        %1660 = vmatprep.subr.bf16.mxu0 0
        %1661 = vmatpush1.bf16.xpose.msra.mxu0 %v1658
        %1662 = vmatprep.subr.bf16.mxu0 0
        %1663 = vmatpush1.bf16.xpose.msra.mxu0 0
        %1664 = vmatprep.subr.bf16.mxu0 0
        %1665 = vmatpush1.bf16.xpose.msra.mxu0 0
        %1666 = vmatprep.subr.bf16.mxu0 0
        %1667 = vmatpush1.bf16.xpose.msra.mxu0 0
        %1668 = vmatprep.subr.bf16.mxu0 0
        %1669 = vmatpush1.bf16.xpose.msra.mxu0 0
        %1670 = vmatprep.subr.bf16.mxu0 0
        %1671 = vmatpush1.bf16.xpose.msra.mxu0 0
        %1672 = vmatprep.subr.bf16.mxu0 0
        %1673 = vmatpush1.bf16.xpose.msra.mxu0 0
        %1674 = vmatprep.subr.bf16.mxu0 0
        %1675 = vmatpush1.bf16.xpose.msra.mxu0 0
        %1676 = vmatprep.subr.bf16.mxu0 0
        %1677 = vmatpush1.bf16.xpose.msra.mxu0 0
        %1678 = vmatprep.subr.bf16.mxu0 0
        %1679 = vmatpush1.bf16.xpose.msra.mxu0 0
        %1680 = vmatprep.subr.bf16.mxu0 0
        %1681 = vmatpush1.bf16.xpose.msra.mxu0 0
        %1682 = vmatprep.subr.bf16.mxu0 0
        %1683 = vmatpush1.bf16.xpose.msra.mxu0 0
        %1684 = vmatprep.subr.bf16.mxu0 0
        %1685 = vmatpush1.bf16.xpose.msra.mxu0 0
        %1686 = vmatprep.subr.bf16.mxu0 0
        %1687 = vmatpush1.bf16.xpose.msra.mxu0 0
        %1688 = vmatprep.subr.bf16.mxu0 0
        %1689 = vmatpush1.bf16.xpose.msra.mxu0 0
        %1690 = vmatprep.subr.bf16.mxu0 0
        %1691 = vmatpush1.bf16.xpose.msra.mxu0 0
        %1692 = vmatprep.mubr.bf16.mxu0 0
        %1693 = vmatmul.mubr.bf16.gmra.mrb[0].mxu0 %v1655
        %v1694 = vpop.f32.mrb[0].mxu0
        %v1695 = vadd.f32 %v790, %v1694
        %v1696 = vpop.f32.mrb[0].mxu0
        %v1697 = vpop.f32.mrb[0].mxu0
        %v1698 = vpop.f32.mrb[0].mxu0
        %1699 = vdwg.mxu0
        %v1701 = vsel %vm869, %v1553, 0
        %v1704 = vsel %vm869, %v1561, 0
        %1706 = vmatprep.subr.bf16.mxu0 0
        %1707 = vmatpush1.bf16.xpose.msra.mxu0 %v1704
        %1708 = vmatprep.subr.bf16.mxu0 0
        %1709 = vmatpush1.bf16.xpose.msra.mxu0 0
        %1710 = vmatprep.subr.bf16.mxu0 0
        %1711 = vmatpush1.bf16.xpose.msra.mxu0 0
        %1712 = vmatprep.subr.bf16.mxu0 0
        %1713 = vmatpush1.bf16.xpose.msra.mxu0 0
        %1714 = vmatprep.subr.bf16.mxu0 0
        %1715 = vmatpush1.bf16.xpose.msra.mxu0 0
        %1716 = vmatprep.subr.bf16.mxu0 0
        %1717 = vmatpush1.bf16.xpose.msra.mxu0 0
        %1718 = vmatprep.subr.bf16.mxu0 0
        %1719 = vmatpush1.bf16.xpose.msra.mxu0 0
        %1720 = vmatprep.subr.bf16.mxu0 0
        %1721 = vmatpush1.bf16.xpose.msra.mxu0 0
        %1722 = vmatprep.subr.bf16.mxu0 0
        %1723 = vmatpush1.bf16.xpose.msra.mxu0 0
        %1724 = vmatprep.subr.bf16.mxu0 0
        %1725 = vmatpush1.bf16.xpose.msra.mxu0 0
        %1726 = vmatprep.subr.bf16.mxu0 0
        %1727 = vmatpush1.bf16.xpose.msra.mxu0 0
        %1728 = vmatprep.subr.bf16.mxu0 0
        %1729 = vmatpush1.bf16.xpose.msra.mxu0 0
        %1730 = vmatprep.subr.bf16.mxu0 0
        %1731 = vmatpush1.bf16.xpose.msra.mxu0 0
        %1732 = vmatprep.subr.bf16.mxu0 0
        %1733 = vmatpush1.bf16.xpose.msra.mxu0 0
        %1734 = vmatprep.subr.bf16.mxu0 0
        %1735 = vmatpush1.bf16.xpose.msra.mxu0 0
        %1736 = vmatprep.subr.bf16.mxu0 0
        %1737 = vmatpush1.bf16.xpose.msra.mxu0 0
        %1738 = vmatprep.mubr.bf16.mxu0 0
        %1739 = vmatmul.mubr.bf16.gmra.mrb[0].mxu0 %v1701
        %v1740 = vpop.f32.mrb[0].mxu0
        %v1741 = vadd.f32 %v790, %v1740
        %v1742 = vpop.f32.mrb[0].mxu0
        %v1743 = vpop.f32.mrb[0].mxu0
        %v1744 = vpop.f32.mrb[0].mxu0
        %1745 = vdwg.mxu0
        %v1746 = vsel %vm869, %v1603, -inf
        %1747 = vmax.xlane.f32.xlu0 %v1746
        %v1748 = vpop.xlane.xlu0 %1747
        %v1749 = vsel %vm869, %v1649, -inf
        %1750 = vmax.xlane.f32.xlu0 %v1749
        %v1751 = vpop.xlane.xlu0 %1750
        %v1752 = vsel %vm869, %v1695, -inf
        %1753 = vmax.xlane.f32.xlu0 %v1752
        %v1754 = vpop.xlane.xlu0 %1753
        %v1755 = vsel %vm869, %v1741, -inf
        %1756 = vmax.xlane.f32.xlu0 %v1755
        %v1757 = vpop.xlane.xlu0 %1756
        %v1758 = vsub.f32 %v1603, %v1748
        %v1759 = vsub.f32 %v1649, %v1751
        %v1760 = vsub.f32 %v1695, %v1754
        %v1761 = vsub.f32 %v1741, %v1757
        %v1762 = vmul.f32 %v1758, 1.442695
        %v1763 = vpow.pop %v1762
        %v1764 = vmul.f32 %v1759, 1.442695
        %v1765 = vpow.pop %v1764
        %v1766 = vmul.f32 %v1760, 1.442695
        %v1767 = vpow.pop %v1766
        %v1768 = vmul.f32 %v1761, 1.442695
        %v1769 = vpow.pop %v1768
        %v1770 = vsel %vm869, %v1763, 0.0
        %1771 = vadd.xlane.f32.xlu0 %v1770
        %v1772 = vpop.xlane.xlu0 %1771
        %v1773 = vsel %vm869, %v1765, 0.0
        %1774 = vadd.xlane.f32.xlu0 %v1773
        %v1775 = vpop.xlane.xlu0 %1774
        %v1776 = vsel %vm869, %v1767, 0.0
        %1777 = vadd.xlane.f32.xlu0 %v1776
        %v1778 = vpop.xlane.xlu0 %1777
        %v1779 = vsel %vm869, %v1769, 0.0
        %1780 = vadd.xlane.f32.xlu0 %v1779
        %v1781 = vpop.xlane.xlu0 %1780
        %v1782 = vrcp.pop %v1772
        %v1783 = vrcp.pop %v1775
        %v1784 = vrcp.pop %v1778
        %v1785 = vrcp.pop %v1781
        %v1786 = vmul.f32 %v1763, %v1782
        %v1787 = vmul.f32 %v1765, %v1783
        %v1788 = vmul.f32 %v1767, %v1784
        %v1789 = vmul.f32 %v1769, %v1785
        %v1790 = vpack.c.bf16 %v1786, %v1786
        %v1791 = vpack.c.bf16 %v1787, %v1787
        %v1792 = vpack.c.bf16 %v1788, %v1788
        %v1793 = vpack.c.bf16 %v1789, %v1789
        %1794 = vrot.lane.b32.xlu0 %v1554, 96
        %v1795 = vpop.permute.xlu0 %1794
        %v1797 = vsel %vm869, %v1790, 0
        %v1800 = vsel %vm1113, %v1795, 0
        %1802 = vmatprep.subr.bf16.mxu0 0
        %1803 = vmatpush1.bf16.msra.mxu0 %v1800
        %1804 = vmatprep.subr.bf16.mxu0 0
        %1805 = vmatpush1.bf16.msra.mxu0 0
        %1806 = vmatprep.subr.bf16.mxu0 0
        %1807 = vmatpush1.bf16.msra.mxu0 0
        %1808 = vmatprep.subr.bf16.mxu0 0
        %1809 = vmatpush1.bf16.msra.mxu0 0
        %1810 = vmatprep.subr.bf16.mxu0 0
        %1811 = vmatpush1.bf16.msra.mxu0 0
        %1812 = vmatprep.subr.bf16.mxu0 0
        %1813 = vmatpush1.bf16.msra.mxu0 0
        %1814 = vmatprep.subr.bf16.mxu0 0
        %1815 = vmatpush1.bf16.msra.mxu0 0
        %1816 = vmatprep.subr.bf16.mxu0 0
        %1817 = vmatpush1.bf16.msra.mxu0 0
        %1818 = vmatprep.subr.bf16.mxu0 0
        %1819 = vmatpush1.bf16.msra.mxu0 0
        %1820 = vmatprep.subr.bf16.mxu0 0
        %1821 = vmatpush1.bf16.msra.mxu0 0
        %1822 = vmatprep.subr.bf16.mxu0 0
        %1823 = vmatpush1.bf16.msra.mxu0 0
        %1824 = vmatprep.subr.bf16.mxu0 0
        %1825 = vmatpush1.bf16.msra.mxu0 0
        %1826 = vmatprep.subr.bf16.mxu0 0
        %1827 = vmatpush1.bf16.msra.mxu0 0
        %1828 = vmatprep.subr.bf16.mxu0 0
        %1829 = vmatpush1.bf16.msra.mxu0 0
        %1830 = vmatprep.subr.bf16.mxu0 0
        %1831 = vmatpush1.bf16.msra.mxu0 0
        %1832 = vmatprep.subr.bf16.mxu0 0
        %1833 = vmatpush1.bf16.msra.mxu0 0
        %1834 = vmatprep.mubr.bf16.mxu0 0
        %1835 = vmatmul.mubr.bf16.gmra.mrb[0].mxu0 %v1797
        %v1836 = vpop.f32.mrb[0].mxu0
        %v1837 = vadd.f32 0.0, %v1836
        %v1838 = vpop.f32.mrb[0].mxu0
        %v1839 = vpop.f32.mrb[0].mxu0
        %v1840 = vpop.f32.mrb[0].mxu0
        %1841 = vdwg.mxu0
        %1842 = vrot.lane.b32.xlu0 %v1557, 96
        %v1843 = vpop.permute.xlu0 %1842
        %v1845 = vsel %vm869, %v1791, 0
        %v1848 = vsel %vm1113, %v1843, 0
        %1850 = vmatprep.subr.bf16.mxu0 0
        %1851 = vmatpush1.bf16.msra.mxu0 %v1848
        %1852 = vmatprep.subr.bf16.mxu0 0
        %1853 = vmatpush1.bf16.msra.mxu0 0
        %1854 = vmatprep.subr.bf16.mxu0 0
        %1855 = vmatpush1.bf16.msra.mxu0 0
        %1856 = vmatprep.subr.bf16.mxu0 0
        %1857 = vmatpush1.bf16.msra.mxu0 0
        %1858 = vmatprep.subr.bf16.mxu0 0
        %1859 = vmatpush1.bf16.msra.mxu0 0
        %1860 = vmatprep.subr.bf16.mxu0 0
        %1861 = vmatpush1.bf16.msra.mxu0 0
        %1862 = vmatprep.subr.bf16.mxu0 0
        %1863 = vmatpush1.bf16.msra.mxu0 0
        %1864 = vmatprep.subr.bf16.mxu0 0
        %1865 = vmatpush1.bf16.msra.mxu0 0
        %1866 = vmatprep.subr.bf16.mxu0 0
        %1867 = vmatpush1.bf16.msra.mxu0 0
        %1868 = vmatprep.subr.bf16.mxu0 0
        %1869 = vmatpush1.bf16.msra.mxu0 0
        %1870 = vmatprep.subr.bf16.mxu0 0
        %1871 = vmatpush1.bf16.msra.mxu0 0
        %1872 = vmatprep.subr.bf16.mxu0 0
        %1873 = vmatpush1.bf16.msra.mxu0 0
        %1874 = vmatprep.subr.bf16.mxu0 0
        %1875 = vmatpush1.bf16.msra.mxu0 0
        %1876 = vmatprep.subr.bf16.mxu0 0
        %1877 = vmatpush1.bf16.msra.mxu0 0
        %1878 = vmatprep.subr.bf16.mxu0 0
        %1879 = vmatpush1.bf16.msra.mxu0 0
        %1880 = vmatprep.subr.bf16.mxu0 0
        %1881 = vmatpush1.bf16.msra.mxu0 0
        %1882 = vmatprep.mubr.bf16.mxu0 0
        %1883 = vmatmul.mubr.bf16.gmra.mrb[0].mxu0 %v1845
        %v1884 = vpop.f32.mrb[0].mxu0
        %v1885 = vadd.f32 0.0, %v1884
        %v1886 = vpop.f32.mrb[0].mxu0
        %v1887 = vpop.f32.mrb[0].mxu0
        %v1888 = vpop.f32.mrb[0].mxu0
        %1889 = vdwg.mxu0
        %1890 = vrot.lane.b32.xlu0 %v1559, 96
        %v1891 = vpop.permute.xlu0 %1890
        %v1893 = vsel %vm869, %v1792, 0
        %v1896 = vsel %vm1113, %v1891, 0
        %1898 = vmatprep.subr.bf16.mxu0 0
        %1899 = vmatpush1.bf16.msra.mxu0 %v1896
        %1900 = vmatprep.subr.bf16.mxu0 0
        %1901 = vmatpush1.bf16.msra.mxu0 0
        %1902 = vmatprep.subr.bf16.mxu0 0
        %1903 = vmatpush1.bf16.msra.mxu0 0
        %1904 = vmatprep.subr.bf16.mxu0 0
        %1905 = vmatpush1.bf16.msra.mxu0 0
        %1906 = vmatprep.subr.bf16.mxu0 0
        %1907 = vmatpush1.bf16.msra.mxu0 0
        %1908 = vmatprep.subr.bf16.mxu0 0
        %1909 = vmatpush1.bf16.msra.mxu0 0
        %1910 = vmatprep.subr.bf16.mxu0 0
        %1911 = vmatpush1.bf16.msra.mxu0 0
        %1912 = vmatprep.subr.bf16.mxu0 0
        %1913 = vmatpush1.bf16.msra.mxu0 0
        %1914 = vmatprep.subr.bf16.mxu0 0
        %1915 = vmatpush1.bf16.msra.mxu0 0
        %1916 = vmatprep.subr.bf16.mxu0 0
        %1917 = vmatpush1.bf16.msra.mxu0 0
        %1918 = vmatprep.subr.bf16.mxu0 0
        %1919 = vmatpush1.bf16.msra.mxu0 0
        %1920 = vmatprep.subr.bf16.mxu0 0
        %1921 = vmatpush1.bf16.msra.mxu0 0
        %1922 = vmatprep.subr.bf16.mxu0 0
        %1923 = vmatpush1.bf16.msra.mxu0 0
        %1924 = vmatprep.subr.bf16.mxu0 0
        %1925 = vmatpush1.bf16.msra.mxu0 0
        %1926 = vmatprep.subr.bf16.mxu0 0
        %1927 = vmatpush1.bf16.msra.mxu0 0
        %1928 = vmatprep.subr.bf16.mxu0 0
        %1929 = vmatpush1.bf16.msra.mxu0 0
        %1930 = vmatprep.mubr.bf16.mxu0 0
        %1931 = vmatmul.mubr.bf16.gmra.mrb[0].mxu0 %v1893
        %v1932 = vpop.f32.mrb[0].mxu0
        %v1933 = vadd.f32 0.0, %v1932
        %v1934 = vpop.f32.mrb[0].mxu0
        %v1935 = vpop.f32.mrb[0].mxu0
        %v1936 = vpop.f32.mrb[0].mxu0
        %1937 = vdwg.mxu0
        %1938 = vrot.lane.b32.xlu0 %v1561, 96
        %v1939 = vpop.permute.xlu0 %1938
        %v1941 = vsel %vm869, %v1793, 0
        %v1944 = vsel %vm1113, %v1939, 0
        %1946 = vmatprep.subr.bf16.mxu0 0
        %1947 = vmatpush1.bf16.msra.mxu0 %v1944
        %1948 = vmatprep.subr.bf16.mxu0 0
        %1949 = vmatpush1.bf16.msra.mxu0 0
        %1950 = vmatprep.subr.bf16.mxu0 0
        %1951 = vmatpush1.bf16.msra.mxu0 0
        %1952 = vmatprep.subr.bf16.mxu0 0
        %1953 = vmatpush1.bf16.msra.mxu0 0
        %1954 = vmatprep.subr.bf16.mxu0 0
        %1955 = vmatpush1.bf16.msra.mxu0 0
        %1956 = vmatprep.subr.bf16.mxu0 0
        %1957 = vmatpush1.bf16.msra.mxu0 0
        %1958 = vmatprep.subr.bf16.mxu0 0
        %1959 = vmatpush1.bf16.msra.mxu0 0
        %1960 = vmatprep.subr.bf16.mxu0 0
        %1961 = vmatpush1.bf16.msra.mxu0 0
        %1962 = vmatprep.subr.bf16.mxu0 0
        %1963 = vmatpush1.bf16.msra.mxu0 0
        %1964 = vmatprep.subr.bf16.mxu0 0
        %1965 = vmatpush1.bf16.msra.mxu0 0
        %1966 = vmatprep.subr.bf16.mxu0 0
        %1967 = vmatpush1.bf16.msra.mxu0 0
        %1968 = vmatprep.subr.bf16.mxu0 0
        %1969 = vmatpush1.bf16.msra.mxu0 0
        %1970 = vmatprep.subr.bf16.mxu0 0
        %1971 = vmatpush1.bf16.msra.mxu0 0
        %1972 = vmatprep.subr.bf16.mxu0 0
        %1973 = vmatpush1.bf16.msra.mxu0 0
        %1974 = vmatprep.subr.bf16.mxu0 0
        %1975 = vmatpush1.bf16.msra.mxu0 0
        %1976 = vmatprep.subr.bf16.mxu0 0
        %1977 = vmatpush1.bf16.msra.mxu0 0
        %1978 = vmatprep.mubr.bf16.mxu0 0
        %1979 = vmatmul.mubr.bf16.gmra.mrb[0].mxu0 %v1941
        %v1980 = vpop.f32.mrb[0].mxu0
        %v1981 = vadd.f32 0.0, %v1980
        %v1982 = vpop.f32.mrb[0].mxu0
        %v1983 = vpop.f32.mrb[0].mxu0
        %v1984 = vpop.f32.mrb[0].mxu0
        %1985 = vdwg.mxu0
        %1987 = vrot.lane.b32.xlu0 %v1885, 8
        %v1988 = vpop.permute.xlu0 %1987
        %1991 = vrot.lane.b32.xlu0 %v1933, 16
        %v1992 = vpop.permute.xlu0 %1991
        %1995 = vrot.lane.b32.xlu0 %v1981, 24
        %v1996 = vpop.permute.xlu0 %1995
        %v1998 = vsel %vm869, %v1837, %v1988
        %v1999 = vsel %vm1314, %v1998, %v1992
        %v2000 = vsel %vm1316, %v1999, %v1996
        %v2001 = vld [vmem:[#allocation16] sm:$0xf]
        %v2002 = vld [vmem:[#allocation16 + $0x4] sm:$0xf]
        %v2003 = vld [vmem:[#allocation16 + $0x8] sm:$0xf]
        %v2004 = vld [vmem:[#allocation16 + $0xc] sm:$0xf]
        %v2005 = vpack.c.bf16 %v2000, %v2000
        %v2006 = vld [vmem:[#allocation17] sm:$0x1]
        %v2008 = vlaneseq
        %v2009 = vshrl.u32 %v2008, 7
        %v2010 = vsub.s32 0, %v2009
        %v2011 = vrot.slane %v2006, %v2010
        %v2017 = vunpack.c.l.b16 %v2001
        %v2018 = vunpack.c.l.b16 %v2002
        %v2019 = vunpack.c.l.b16 %v2003
        %v2020 = vunpack.c.l.b16 %v2004
        %v2021 = vpack.c.b16 %v2018, %v2017
        %v2022 = vpack.c.b16 %v2020, %v2019
        %v2026 = vsel %vm815, %v2005, 0
        %2028 = vmatprep.subr.bf16.mxu0 0
        %2029 = vmatpush1.bf16.msra.mxu0 %v2021
        %2030 = vmatprep.subr.bf16.mxu0 0
        %2031 = vmatpush1.bf16.msra.mxu0 %v2022
        %2032 = vmatprep.subr.bf16.mxu0 0
        %2033 = vmatpush1.bf16.msra.mxu0 0
        %2034 = vmatprep.subr.bf16.mxu0 0
        %2035 = vmatpush1.bf16.msra.mxu0 0
        %2036 = vmatprep.subr.bf16.mxu0 0
        %2037 = vmatpush1.bf16.msra.mxu0 0
        %2038 = vmatprep.subr.bf16.mxu0 0
        %2039 = vmatpush1.bf16.msra.mxu0 0
        %2040 = vmatprep.subr.bf16.mxu0 0
        %2041 = vmatpush1.bf16.msra.mxu0 0
        %2042 = vmatprep.subr.bf16.mxu0 0
        %2043 = vmatpush1.bf16.msra.mxu0 0
        %2044 = vmatprep.subr.bf16.mxu0 0
        %2045 = vmatpush1.bf16.msra.mxu0 0
        %2046 = vmatprep.subr.bf16.mxu0 0
        %2047 = vmatpush1.bf16.msra.mxu0 0
        %2048 = vmatprep.subr.bf16.mxu0 0
        %2049 = vmatpush1.bf16.msra.mxu0 0
        %2050 = vmatprep.subr.bf16.mxu0 0
        %2051 = vmatpush1.bf16.msra.mxu0 0
        %2052 = vmatprep.subr.bf16.mxu0 0
        %2053 = vmatpush1.bf16.msra.mxu0 0
        %2054 = vmatprep.subr.bf16.mxu0 0
        %2055 = vmatpush1.bf16.msra.mxu0 0
        %2056 = vmatprep.subr.bf16.mxu0 0
        %2057 = vmatpush1.bf16.msra.mxu0 0
        %2058 = vmatprep.subr.bf16.mxu0 0
        %2059 = vmatpush1.bf16.msra.mxu0 0
        %2060 = vmatprep.mubr.bf16.mxu0 0
        %2061 = vmatmul.mubr.bf16.gmra.mrb[0].mxu0 %v2026
        %v2062 = vpop.f32.mrb[0].mxu0
        %v2063 = vadd.f32 %v2011, %v2062
        %v2064 = vpop.f32.mrb[0].mxu0
        %v2065 = vpop.f32.mrb[0].mxu0
        %v2066 = vpop.f32.mrb[0].mxu0
        %2067 = vdwg.mxu0
        %v2068 = vadd.f32 %v1411, %v2063
        %v2069 = vld [vmem:[%s18 + $0x1] sm:$0x1]
        %v2070 = vld [vmem:[%s19 + $0x1] sm:$0x1]
        %v2071 = vsel %vm815, %v2068, 0.0
        %2072 = vadd.xlane.f32.xlu0 %v2071
        %v2073 = vpop.xlane.xlu0 %2072
        %v2074 = vmul.f32 %v2073, %v1391
        %v2075 = vsub.f32 %v2068, %v2074
        %v2076 = vmul.f32 %v2075, %v2075
        %v2077 = vsel %vm815, %v2076, 0.0
        %2078 = vadd.xlane.f32.xlu0 %v2077
        %v2079 = vpop.xlane.xlu0 %2078
        %v2080 = vmul.f32 %v2079, %v1391
        %v2081 = vadd.f32 %v2080, 1e-05
        %v2082 = vrsqrt.pop %v2081
        %v2083 = vmul.f32 %v2075, %v2082
        %v2084 = vlaneseq
        %v2085 = vshrl.u32 %v2084, 7
        %v2086 = vsub.s32 0, %v2085
        %v2087 = vrot.slane %v2069, %v2086
        %v2088 = vmul.f32 %v2083, %v2087
        %v2089 = vlaneseq
        %v2090 = vshrl.u32 %v2089, 7
        %v2091 = vsub.s32 0, %v2090
        %v2092 = vrot.slane %v2070, %v2091
        %v2093 = vadd.f32 %v2088, %v2092
        %v2094 = vld [vmem:[%s14] sm:$0xf]
        %v2095 = vld [vmem:[%s14 + $0x4] sm:$0xf]
        %v2096 = vld [vmem:[%s14 + $0x8] sm:$0xf]
        %v2097 = vld [vmem:[%s14 + $0xc] sm:$0xf]
        %v2098 = vpack.c.bf16 %v2093, %v2093
        %v2099 = vld [vmem:[#allocation19] sm:$0x1]
        %v2101 = vlaneseq
        %v2102 = vshrl.u32 %v2101, 7
        %v2103 = vsub.s32 0, %v2102
        %v2104 = vrot.slane %v2099, %v2103
        %v2110 = vunpack.c.l.b16 %v2094
        %v2111 = vunpack.c.l.b16 %v2095
        %v2112 = vunpack.c.l.b16 %v2096
        %v2113 = vunpack.c.l.b16 %v2097
        %v2114 = vpack.c.b16 %v2111, %v2110
        %v2115 = vpack.c.b16 %v2113, %v2112
        %v2119 = vsel %vm815, %v2098, 0
        %2121 = vmatprep.subr.bf16.mxu0 0
        %2122 = vmatpush1.bf16.msra.mxu0 %v2114
        %2123 = vmatprep.subr.bf16.mxu0 0
        %2124 = vmatpush1.bf16.msra.mxu0 %v2115
        %2125 = vmatprep.subr.bf16.mxu0 0
        %2126 = vmatpush1.bf16.msra.mxu0 0
        %2127 = vmatprep.subr.bf16.mxu0 0
        %2128 = vmatpush1.bf16.msra.mxu0 0
        %2129 = vmatprep.subr.bf16.mxu0 0
        %2130 = vmatpush1.bf16.msra.mxu0 0
        %2131 = vmatprep.subr.bf16.mxu0 0
        %2132 = vmatpush1.bf16.msra.mxu0 0
        %2133 = vmatprep.subr.bf16.mxu0 0
        %2134 = vmatpush1.bf16.msra.mxu0 0
        %2135 = vmatprep.subr.bf16.mxu0 0
        %2136 = vmatpush1.bf16.msra.mxu0 0
        %2137 = vmatprep.subr.bf16.mxu0 0
        %2138 = vmatpush1.bf16.msra.mxu0 0
        %2139 = vmatprep.subr.bf16.mxu0 0
        %2140 = vmatpush1.bf16.msra.mxu0 0
        %2141 = vmatprep.subr.bf16.mxu0 0
        %2142 = vmatpush1.bf16.msra.mxu0 0
        %2143 = vmatprep.subr.bf16.mxu0 0
        %2144 = vmatpush1.bf16.msra.mxu0 0
        %2145 = vmatprep.subr.bf16.mxu0 0
        %2146 = vmatpush1.bf16.msra.mxu0 0
        %2147 = vmatprep.subr.bf16.mxu0 0
        %2148 = vmatpush1.bf16.msra.mxu0 0
        %2149 = vmatprep.subr.bf16.mxu0 0
        %2150 = vmatpush1.bf16.msra.mxu0 0
        %2151 = vmatprep.subr.bf16.mxu0 0
        %2152 = vmatpush1.bf16.msra.mxu0 0
        %2153 = vmatprep.mubr.bf16.mxu0 0
        %2154 = vmatmul.mubr.bf16.gmra.mrb[0].mxu0 %v2119
        %v2155 = vpop.f32.mrb[0].mxu0
        %v2156 = vadd.f32 %v2104, %v2155
        %v2157 = vpop.f32.mrb[0].mxu0
        %v2158 = vpop.f32.mrb[0].mxu0
        %v2159 = vpop.f32.mrb[0].mxu0
        %2160 = vdwg.mxu0
        %v2161 = vmax.f32 %v2156, 0.0
        %v2162 = vld [vmem:[%s16] sm:$0xf]
        %v2163 = vld [vmem:[%s16 + $0x4] sm:$0xf]
        %v2164 = vld [vmem:[%s16 + $0x8] sm:$0xf]
        %v2165 = vld [vmem:[%s16 + $0xc] sm:$0xf]
        %v2166 = vld [vmem:[%s16 + $0x10] sm:$0xf]
        %v2167 = vld [vmem:[%s16 + $0x14] sm:$0xf]
        %v2168 = vld [vmem:[%s16 + $0x18] sm:$0xf]
        %v2169 = vld [vmem:[%s16 + $0x1c] sm:$0xf]
        %v2170 = vpack.c.bf16 %v2161, %v2161
        %v2171 = vld [vmem:[%s17] sm:$0x1]
        %v2173 = vlaneseq
        %v2174 = vshrl.u32 %v2173, 7
        %v2175 = vsub.s32 0, %v2174
        %v2176 = vrot.slane %v2171, %v2175
        %v2186 = vunpack.c.l.b16 %v2162
        %v2187 = vunpack.c.l.b16 %v2163
        %v2188 = vunpack.c.l.b16 %v2164
        %v2189 = vunpack.c.l.b16 %v2165
        %v2190 = vunpack.c.l.b16 %v2166
        %v2191 = vunpack.c.l.b16 %v2167
        %v2192 = vunpack.c.l.b16 %v2168
        %v2193 = vunpack.c.l.b16 %v2169
        %v2194 = vpack.c.b16 %v2187, %v2186
        %v2195 = vpack.c.b16 %v2189, %v2188
        %v2196 = vpack.c.b16 %v2191, %v2190
        %v2197 = vpack.c.b16 %v2193, %v2192
        %vm2202 = vcmask 523264
        %v2204 = vsel %vm2202, %v2170, 0
        %2206 = vmatprep.subr.bf16.mxu0 0
        %2207 = vmatpush1.bf16.msra.mxu0 %v2194
        %2208 = vmatprep.subr.bf16.mxu0 0
        %2209 = vmatpush1.bf16.msra.mxu0 %v2195
        %2210 = vmatprep.subr.bf16.mxu0 0
        %2211 = vmatpush1.bf16.msra.mxu0 %v2196
        %2212 = vmatprep.subr.bf16.mxu0 0
        %2213 = vmatpush1.bf16.msra.mxu0 %v2197
        %2214 = vmatprep.subr.bf16.mxu0 0
        %2215 = vmatpush1.bf16.msra.mxu0 0
        %2216 = vmatprep.subr.bf16.mxu0 0
        %2217 = vmatpush1.bf16.msra.mxu0 0
        %2218 = vmatprep.subr.bf16.mxu0 0
        %2219 = vmatpush1.bf16.msra.mxu0 0
        %2220 = vmatprep.subr.bf16.mxu0 0
        %2221 = vmatpush1.bf16.msra.mxu0 0
        %2222 = vmatprep.subr.bf16.mxu0 0
        %2223 = vmatpush1.bf16.msra.mxu0 0
        %2224 = vmatprep.subr.bf16.mxu0 0
        %2225 = vmatpush1.bf16.msra.mxu0 0
        %2226 = vmatprep.subr.bf16.mxu0 0
        %2227 = vmatpush1.bf16.msra.mxu0 0
        %2228 = vmatprep.subr.bf16.mxu0 0
        %2229 = vmatpush1.bf16.msra.mxu0 0
        %2230 = vmatprep.subr.bf16.mxu0 0
        %2231 = vmatpush1.bf16.msra.mxu0 0
        %2232 = vmatprep.subr.bf16.mxu0 0
        %2233 = vmatpush1.bf16.msra.mxu0 0
        %2234 = vmatprep.subr.bf16.mxu0 0
        %2235 = vmatpush1.bf16.msra.mxu0 0
        %2236 = vmatprep.subr.bf16.mxu0 0
        %2237 = vmatpush1.bf16.msra.mxu0 0
        %2238 = vmatprep.mubr.bf16.mxu0 0
        %2239 = vmatmul.mubr.bf16.gmra.mrb[0].mxu0 %v2204
        %v2240 = vpop.f32.mrb[0].mxu0
        %v2241 = vadd.f32 %v2176, %v2240
        %v2242 = vpop.f32.mrb[0].mxu0
        %v2243 = vpop.f32.mrb[0].mxu0
        %v2244 = vpop.f32.mrb[0].mxu0
        %2245 = vdwg.mxu0
        %v2246 = vadd.f32 %v2093, %v2241
        %v2247 = vld [vmem:[%s18 + $0x2] sm:$0x1]
        %v2248 = vld [vmem:[%s19 + $0x2] sm:$0x1]
        %v2249 = vsel %vm815, %v2246, 0.0
        %2250 = vadd.xlane.f32.xlu0 %v2249
        %v2251 = vpop.xlane.xlu0 %2250
        %v2252 = vmul.f32 %v2251, %v1391
        %v2253 = vsub.f32 %v2246, %v2252
        %v2254 = vmul.f32 %v2253, %v2253
        %v2255 = vsel %vm815, %v2254, 0.0
        %2256 = vadd.xlane.f32.xlu0 %v2255
        %v2257 = vpop.xlane.xlu0 %2256
        %v2258 = vmul.f32 %v2257, %v1391
        %v2259 = vadd.f32 %v2258, 1e-05
        %v2260 = vrsqrt.pop %v2259
        %v2261 = vmul.f32 %v2253, %v2260
        %v2262 = vlaneseq
        %v2263 = vshrl.u32 %v2262, 7
        %v2264 = vsub.s32 0, %v2263
        %v2265 = vrot.slane %v2247, %v2264
        %v2266 = vmul.f32 %v2261, %v2265
        %v2267 = vlaneseq
        %v2268 = vshrl.u32 %v2267, 7
        %v2269 = vsub.s32 0, %v2268
        %v2270 = vrot.slane %v2248, %v2269
        %v2271 = vadd.f32 %v2266, %v2270
        %2272 = vst.msk [vmem:[%s777] sm:$0xff] %vm815, %v2271
        %s2273 = sand.u32 %s478, 1
        %s2274 = scalar_lea.sflag [#allocation4], %s2273
        %s2275 = sand.u32 %s478, 1
        %s2276 = smul.addr %s2275, 8
        %s2277 = scalar_lea.vmem [#allocation20], %s2276
        // Predicated region
        $region145: #{tpu_custom_call.1} parent=99 // pred_check
          %p2278 = pneg %p488
        $region146: #{tpu_custom_call.1} parent=99 // pred_check_branch
          %2280 = sbr.rel (%p2278) target = $region148
        $region147: #{tpu_custom_call.1} parent=99 // pred_region
          %s2282 = ssub.s32 128, 128
          %2283 = vsyncadd %s2274, %s2282
          %s2284 = smul.addr %s40, 128
          %s2285 = scalar_lea.hbm %s20, %s2284
          %s2287 = sshll.u32 %s2277, 4
          %s2288 = int_to_ptr.vmem [resolvable:$true] %s2287
          %2290 = dma.vmem_to_hbm [thread:$0]  %s2288, 128, %s2285, %s2274
        $region148: #{tpu_custom_call.1} parent=99 // pred_fallthru
          _
      $region100: #{tpu_custom_call.1} parent=5 // pred_fallthru
        _
      %p2291 = scmp.le.s32.totalorder 2, %s35
      // Predicated region
      $region149: #{tpu_custom_call.1} parent=5 // pred_check
        %p2292 = pneg %p2291
      $region150: #{tpu_custom_call.1} parent=5 // pred_check_branch
        %2294 = sbr.rel (%p2292) target = $region152
      $region151: #{tpu_custom_call.1} parent=5 // pred_region
        %s2295 = ssub.s32 %s35, 2
        // Predicated region
        $region153: #{tpu_custom_call.1} parent=151 // pred_check
          %p2296 = pneg %p494
        $region154: #{tpu_custom_call.1} parent=151 // pred_check_branch
          %2298 = sbr.rel (%p2296) target = $region156
        $region155: #{tpu_custom_call.1} parent=151 // pred_region
          %s2299 = sand.u32 %s479, 1
          %s2300 = scalar_lea.sflag [#allocation4], %s2299
          %s2301 = sand.u32 %s479, 1
          %s2302 = smul.addr %s2301, 8
          %s2303 = scalar_lea.vmem [#allocation20], %s2302
          %2304 = dma.done %s2300, 128
        $region156: #{tpu_custom_call.1} parent=151 // pred_fallthru
          _
      $region152: #{tpu_custom_call.1} parent=5 // pred_fallthru
        _
    $region6: #{tpu_custom_call.1} parent=1 // loop_footer
      %s39 = sadd.s32 1, %s35
    $region7: #{tpu_custom_call.1} parent=1 // loop_footer_branch
      %34 = sbr.rel target = $region3
    $region8: #{tpu_custom_call.1} parent=1 // loop_exit
      _
    %2305 = vsyncpa [#allocation3], 1
    %s2306 = scalar_lea.sflag [#allocation3], 1
    %2307 = vsyncpa %s2306, 1
    %2308 = vsyncpa [#allocation6], 1
    %2309 = vsyncpa [#allocation9], 1
    %2310 = vsyncpa [#allocation12], 1
    %2311 = vsyncpa [#allocation15], 1
    %2312 = vsyncpa [#allocation18], 1
    %2313 = vsyncpa [#allocation4], 1
    %s2314 = scalar_lea.sflag [#allocation4], 1
    %2315 = vsyncpa %s2314, 1

</llo_original>
